<compile_context>
chip_gen: v5e
topology: v5e:2x2
jax: 0.10.0
libtpu: 0.0.40
codegen_flags: <defaults>
</compile_context>

<pallas_src>
import functools

import jax
import jax.numpy as jnp
from jax.experimental import pallas as pl
from jax.experimental.pallas import tpu as pltpu


# ------------------------------ Pallas kernel ------------------------------ #

def _residual_block_kernel(*refs, stride, Ho, Wo, Cpad, proj):
    """Fused ResidualBlock forward for one batch element.

    refs (in order):
      x_ref   : (s*s, Hph, Wph, Cin)  stride-phases of the padded input
      sc_ref  : (1, Ho, Wo, Cin|Cpad) shortcut input (subsampled x / padded x)
      w1_ref  : (9, Cin,  Cpad)       conv1 weights, BN1 scale folded, 0-padded
      b1_ref  : (1, Cpad)             BN1 shift
      w2_ref  : (9, Cpad, Cpad)       conv2 weights, BN2 scale folded, 0-padded
      b2_ref  : (1, Cpad)             BN2 shift
      [ws_ref : (1, Cin, Cpad), bs_ref : (1, Cpad)]   (projection shortcut only)
      o_ref   : (1, Ho, Wo, Cpad)     output block (lane-dense: Cpad = 128k)
      y1p_ref : (Ho+2, Wo+2, Cpad)    VMEM scratch: zero-ring padded y1
    """
    if proj:
        (x_ref, sc_ref, w1_ref, b1_ref, w2_ref, b2_ref,
         ws_ref, bs_ref, o_ref, y1p_ref) = refs
    else:
        (x_ref, sc_ref, w1_ref, b1_ref, w2_ref, b2_ref,
         o_ref, y1p_ref) = refs
        ws_ref = bs_ref = None

    s = stride
    M = Ho * Wo

    # ---- conv1: 3x3 / stride s (in-kernel im2col via 9 tap matmuls) + ReLU --
    acc1 = jnp.zeros((M, Cpad), jnp.float32)
    for dh in range(3):
        for dw in range(3):
            p = (dh % s) * s + (dw % s)          # stride phase of this tap
            oh0, ow0 = dh // s, dw // s          # static offsets within phase
            patch = x_ref[p, oh0:oh0 + Ho, ow0:ow0 + Wo, :]     # (Ho, Wo, Cin)
            acc1 = acc1 + jnp.dot(
                patch.reshape(M, patch.shape[-1]), w1_ref[dh * 3 + dw],
                preferred_element_type=jnp.float32)
    y1 = jnp.maximum(acc1 + b1_ref[...], 0.0)                   # (M, Cpad)

    # Stage y1 with a zero ring in VMEM (padding for conv2) — no HBM round trip.
    y1p_ref[...] = jnp.zeros_like(y1p_ref)
    y1p_ref[1:1 + Ho, 1:1 + Wo, :] = y1.reshape(Ho, Wo, Cpad)

    # ---- conv2: 3x3 / stride 1 over the padded y1 scratch -------------------
    acc2 = jnp.zeros((M, Cpad), jnp.float32)
    for dh in range(3):
        for dw in range(3):
            patch = y1p_ref[dh:dh + Ho, dw:dw + Wo, :]          # (Ho, Wo, Cpad)
            acc2 = acc2 + jnp.dot(
                patch.reshape(M, Cpad), w2_ref[dh * 3 + dw],
                preferred_element_type=jnp.float32)
    left = acc2 + b2_ref[...]

    # ---- shortcut branch + residual add + final ReLU ------------------------
    if proj:   # 1x1 conv (stride already applied in the wrapper subsampling)
        sc = jnp.dot(sc_ref[0].reshape(M, sc_ref.shape[-1]), ws_ref[0],
                     preferred_element_type=jnp.float32) + bs_ref[...]
    else:      # identity (channel-padded x)
        sc = sc_ref[0].reshape(M, Cpad)

    out = jnp.maximum(left + sc, 0.0)
    o_ref[...] = out.reshape(1, Ho, Wo, Cpad).astype(o_ref.dtype)


# ------------------------------ JAX glue code ------------------------------ #

def _fold_bn(bn, eps=1e-5):
    """BatchNorm2d (eval mode) -> per-channel (scale, shift)."""
    scale = bn["gamma"] * jax.lax.rsqrt(bn["var"] + eps)
    shift = bn["beta"] - bn["mean"] * scale
    return scale, shift


def _prep_w(w_ochw, scale, cin_pad, cout_pad):
    """(Cout, Cin, kh, kw) -> (kh*kw, cin_pad, cout_pad), BN scale folded in."""
    cout, cin, kh, kw = w_ochw.shape
    w = jnp.transpose(w_ochw, (2, 3, 1, 0)).reshape(kh * kw, cin, cout)
    w = w * scale.reshape(1, 1, cout)
    return jnp.pad(w, ((0, 0), (0, cin_pad - cin),
                       (0, cout_pad - cout))).astype(jnp.float32)


def _prep_shift(shift, cout_pad):
    c = shift.shape[0]
    return jnp.pad(shift.reshape(1, c), ((0, 0), (0, cout_pad - c))).astype(jnp.float32)


def residual_block_forward(params, x_nchw, stride):
    """Pallas implementation of ResidualBlock.forward (BN in eval mode)."""
    x = jnp.transpose(x_nchw, (0, 2, 3, 1)).astype(jnp.float32)   # NCHW -> NHWC
    N, H, W, Cin = x.shape
    Cout = params["w1"].shape[0]
    Cpad = ((Cout + 127) // 128) * 128            # lane-dense channel padding
    s = int(stride)
    if s != 1:
        assert H % s == 0 and W % s == 0, "stride path assumes H, W % stride == 0"
    Ho = (H - 1) // s + 1
    Wo = (W - 1) // s + 1
    assert Wo % 8 == 0, "Wo must be a multiple of 8 (sublane tile)"

    # Fold BN scales into the weights; shifts stay as (1, Cpad) vectors.
    s1, b1 = _fold_bn(params["bn1"])
    s2, b2 = _fold_bn(params["bn2"])
    w1 = _prep_w(params["w1"], s1, Cin, Cpad)     # (9, Cin,  Cpad)
    w2 = _prep_w(params["w2"], s2, Cpad, Cpad)    # (9, Cpad, Cpad)
    b1v = _prep_shift(b1, Cpad)
    b2v = _prep_shift(b2, Cpad)

    # Stride-phase decomposition of the spatially padded input (cheap, ~1x
    # input bytes) so every in-kernel tap slice is static and unit-stride.
    xp = jnp.pad(x, ((0, 0), (1, 1), (1, 1), (0, 0)))
    halo = 2 // s                                  # (k-1)//stride, k=3
    Hph, Wph = Ho + halo, Wo + halo
    phases = jnp.stack(
        [xp[:, p::s, q::s, :][:, :Hph, :Wph, :] for p in range(s) for q in range(s)],
        axis=1)                                    # (N, s*s, Hph, Wph, Cin)
    phases = phases.reshape(N * s * s, Hph, Wph, Cin)

    proj = (s != 1) or (Cin != Cout)
    if proj:
        sc_in = x[:, ::s, ::s, :]                  # 1x1/stride-s conv input
        ss_, bs_ = _fold_bn(params["bns"])
        ws = _prep_w(params["ws"], ss_, Cin, Cpad)     # (1, Cin, Cpad)
        bsv = _prep_shift(bs_, Cpad)
        extra_args = [ws, bsv]
        extra_specs = [pl.BlockSpec(ws.shape, lambda n: (0, 0, 0)),
                       pl.BlockSpec(bsv.shape, lambda n: (0, 0))]
    else:
        sc_in = jnp.pad(x, ((0, 0), (0, 0), (0, 0), (0, Cpad - Cin)))
        extra_args, extra_specs = [], []

    kernel = functools.partial(_residual_block_kernel, stride=s, Ho=Ho, Wo=Wo,
                               Cpad=Cpad, proj=proj)

    in_specs = [
        # one batch element's stride phases per grid step
        pl.BlockSpec((s * s, Hph, Wph, Cin), lambda n: (n, 0, 0, 0)),
        pl.BlockSpec((1,) + sc_in.shape[1:], lambda n: (n, 0, 0, 0)),
        # weights / shifts: constant index_map -> resident across the grid
        pl.BlockSpec(w1.shape, lambda n: (0, 0, 0)),
        pl.BlockSpec(b1v.shape, lambda n: (0, 0)),
        pl.BlockSpec(w2.shape, lambda n: (0, 0, 0)),
        pl.BlockSpec(b2v.shape, lambda n: (0, 0)),
    ] + extra_specs

    out_nhwc = pl.pallas_call(
        kernel,
        out_shape=jax.ShapeDtypeStruct((N, Ho, Wo, Cpad), jnp.float32),
        grid_spec=pltpu.PrefetchScalarGridSpec(
            num_scalar_prefetch=0,
            grid=(N,),
            in_specs=in_specs,
            out_specs=pl.BlockSpec((1, Ho, Wo, Cpad), lambda n: (n, 0, 0, 0)),
            scratch_shapes=[pltpu.VMEM((Ho + 2, Wo + 2, Cpad), jnp.float32)],
        ),
        compiler_params=pltpu.CompilerParams(dimension_semantics=("parallel",)),
    )(phases, sc_in, w1, b1v, w2, b2v, *extra_args)

    out = out_nhwc[..., :Cout]                     # drop lane padding
    return jnp.transpose(out, (0, 3, 1, 2))        # NHWC -> NCHW (PyTorch API)


# --------------------------- pure-JAX reference ----------------------------- #

def _ref_conv(x_nhwc, w_ochw, stride, pad):
    return jax.lax.conv_general_dilated(
        x_nhwc, jnp.transpose(w_ochw, (2, 3, 1, 0)),
        window_strides=(stride, stride), padding=[(pad, pad), (pad, pad)],
        dimension_numbers=("NHWC", "HWIO", "NHWC"))


def residual_block_reference(params, x_nchw, stride):
    x = jnp.transpose(x_nchw, (0, 2, 3, 1))
    Cin, Cout = x.shape[-1], params["w1"].shape[0]
    s1, b1 = _fold_bn(params["bn1"])
    y = jnp.maximum(_ref_conv(x, params["w1"], stride, 1) * s1 + b1, 0.0)
    s2, b2 = _fold_bn(params["bn2"])
    left = _ref_conv(y, params["w2"], 1, 1) * s2 + b2
    if stride != 1 or Cin != Cout:
        ss, bs = _fold_bn(params["bns"])
        short = _ref_conv(x, params["ws"], stride, 0) * ss + bs
    else:
        short = x
    out = jnp.maximum(left + short, 0.0)
    return jnp.transpose(out, (0, 3, 1, 2))


# ---------------------------------- main ------------------------------------ #

def _make_bn_params(key, c):
    k0, k1, k2, k3 = jax.random.split(key, 4)
    return {
        "gamma": 1.0 + 0.1 * jax.random.normal(k0, (c,), jnp.float32),
        "beta": 0.1 * jax.random.normal(k1, (c,), jnp.float32),
        "mean": 0.1 * jax.random.normal(k2, (c,), jnp.float32),
        "var": 0.5 + 0.5 * jnp.abs(jax.random.normal(k3, (c,), jnp.float32)),
    }


def _make_block_params(key, cin, cout, need_proj):
    kw1, kw2, kws, kb1, kb2, kbs = jax.random.split(key, 6)
    p = {
        "w1": 0.1 * jax.random.normal(kw1, (cout, cin, 3, 3), jnp.float32),
        "w2": 0.1 * jax.random.normal(kw2, (cout, cout, 3, 3), jnp.float32),
        "bn1": _make_bn_params(kb1, cout),
        "bn2": _make_bn_params(kb2, cout),
    }
    if need_proj:
        p["ws"] = 0.1 * jax.random.normal(kws, (cout, cin, 1, 1), jnp.float32)
        p["bns"] = _make_bn_params(kbs, cout)
    return p


if __name__ == "__main__":
    key = jax.random.PRNGKey(0)
    kp1, kx1, kp2, kx2 = jax.random.split(key, 4)

    forward = jax.jit(residual_block_forward, static_argnums=(2,))

    # Tolerance note: default (fast) MXU f32 precision on both sides; with
    # Precision.HIGHEST everywhere these match to ~1e-6.
    TOL = 1e-2

    # Case 1: ResidualBlock(inchannel=4, outchannel=8, stride=2) -> projection shortcut.
    N, Cin, Cout, H, W, stride = 2, 4, 8, 16, 16, 2
    x1 = jax.random.normal(kx1, (N, Cin, H, W), jnp.float32)
    p1 = _make_block_params(kp1, Cin, Cout, need_proj=True)
    out1 = jax.block_until_ready(forward(p1, x1, stride))
    ref1 = jax.block_until_ready(residual_block_reference(p1, x1, stride))
    assert out1.shape == (N, Cout, H // stride, W // stride), out1.shape
    assert jnp.allclose(out1, ref1, rtol=TOL, atol=TOL), \
        float(jnp.max(jnp.abs(out1 - ref1)))

    # Case 2: ResidualBlock(inchannel=8, outchannel=8, stride=1) -> identity shortcut.
    N, Cin, Cout, H, W, stride = 2, 8, 8, 16, 16, 1
    x2 = jax.random.normal(kx2, (N, Cin, H, W), jnp.float32)
    p2 = _make_block_params(kp2, Cin, Cout, need_proj=False)
    out2 = jax.block_until_ready(forward(p2, x2, stride))
    ref2 = jax.block_until_ready(residual_block_reference(p2, x2, stride))
    assert out2.shape == (N, Cout, H, W), out2.shape
    assert jnp.allclose(out2, ref2, rtol=TOL, atol=TOL), \
        float(jnp.max(jnp.abs(out2 - ref2)))

    print("KERNEL_OK")
</pallas_src>

<mosaic_0001>
module attributes {stable_mosaic.version = 11 : i64} {
  func.func @_residual_block_kernel(%arg0: i32, %arg1: memref<4x9x9x4xf32, #tpu.memory_space<vmem>>, %arg2: memref<1x8x8x4xf32, #tpu.memory_space<vmem>>, %arg3: memref<9x4x128xf32, #tpu.memory_space<vmem>>, %arg4: memref<1x128xf32, #tpu.memory_space<vmem>>, %arg5: memref<9x128x128xf32, #tpu.memory_space<vmem>>, %arg6: memref<1x128xf32, #tpu.memory_space<vmem>>, %arg7: memref<1x4x128xf32, #tpu.memory_space<vmem>>, %arg8: memref<1x128xf32, #tpu.memory_space<vmem>>, %arg9: memref<1x8x8x128xf32, #tpu.memory_space<vmem>>, %arg10: memref<10x10x128xf32, #tpu.memory_space<vmem>>) attributes {dimension_semantics = [#tpu.dimension_semantics<parallel>], iteration_bounds = array<i64: 2>, scalar_prefetch = 0 : i64, scratch_operands = 1 : i64, tpu.core_type = #tpu.core_type<tc>, window_params = [{transform_indices = @transform_0, window_bounds = array<i64: 4, 9, 9, 4>}, {transform_indices = @transform_1, window_bounds = array<i64: 1, 8, 8, 4>}, {pipeline_mode = #tpu.pipeline_mode<synchronous>, transform_indices = @transform_2, window_bounds = array<i64: 9, 4, 128>}, {pipeline_mode = #tpu.pipeline_mode<synchronous>, transform_indices = @transform_3, window_bounds = array<i64: 1, 128>}, {pipeline_mode = #tpu.pipeline_mode<synchronous>, transform_indices = @transform_4, window_bounds = array<i64: 9, 128, 128>}, {pipeline_mode = #tpu.pipeline_mode<synchronous>, transform_indices = @transform_5, window_bounds = array<i64: 1, 128>}, {pipeline_mode = #tpu.pipeline_mode<synchronous>, transform_indices = @transform_6, window_bounds = array<i64: 1, 4, 128>}, {pipeline_mode = #tpu.pipeline_mode<synchronous>, transform_indices = @transform_7, window_bounds = array<i64: 1, 128>}, {transform_indices = @transform_8, window_bounds = array<i64: 1, 8, 8, 128>}]} {
    %cst = arith.constant 0.000000e+00 : f32
    %0 = vector.broadcast %cst : f32 to vector<64x128xf32>
    %c0 = arith.constant 0 : index
    %c0_0 = arith.constant 0 : index
    %c0_1 = arith.constant 0 : index
    %c0_2 = arith.constant 0 : index
    %1 = vector.load %arg1[%c0, %c0_0, %c0_1, %c0_2] : memref<4x9x9x4xf32, #tpu.memory_space<vmem>>, vector<1x8x8x4xf32>
    %2 = vector.shape_cast %1 : vector<1x8x8x4xf32> to vector<8x8x4xf32>
    %3 = vector.shape_cast %2 : vector<8x8x4xf32> to vector<64x4xf32>
    %c0_3 = arith.constant 0 : index
    %c0_4 = arith.constant 0 : index
    %c0_5 = arith.constant 0 : index
    %4 = vector.load %arg3[%c0_3, %c0_4, %c0_5] : memref<9x4x128xf32, #tpu.memory_space<vmem>>, vector<1x4x128xf32>
    %5 = vector.shape_cast %4 : vector<1x4x128xf32> to vector<4x128xf32>
    %cst_6 = arith.constant dense<0.000000e+00> : vector<64x128xf32>
    %6 = tpu.matmul %3, %5, %cst_6 {dimension_numbers = #tpu.dot_dimension_numbers<[1], [0], [0], [1], [0, 0, 1, 1], [], []>} : vector<64x4xf32>, vector<4x128xf32>, vector<64x128xf32> -> vector<64x128xf32>
    %7 = arith.addf %0, %6 : vector<64x128xf32>
    %c1 = arith.constant 1 : index
    %c0_7 = arith.constant 0 : index
    %c0_8 = arith.constant 0 : index
    %c0_9 = arith.constant 0 : index
    %8 = vector.load %arg1[%c1, %c0_7, %c0_8, %c0_9] : memref<4x9x9x4xf32, #tpu.memory_space<vmem>>, vector<1x8x8x4xf32>
    %9 = vector.shape_cast %8 : vector<1x8x8x4xf32> to vector<8x8x4xf32>
    %10 = vector.shape_cast %9 : vector<8x8x4xf32> to vector<64x4xf32>
    %c1_10 = arith.constant 1 : index
    %c0_11 = arith.constant 0 : index
    %c0_12 = arith.constant 0 : index
    %11 = vector.load %arg3[%c1_10, %c0_11, %c0_12] : memref<9x4x128xf32, #tpu.memory_space<vmem>>, vector<1x4x128xf32>
    %12 = vector.shape_cast %11 : vector<1x4x128xf32> to vector<4x128xf32>
    %cst_13 = arith.constant dense<0.000000e+00> : vector<64x128xf32>
    %13 = tpu.matmul %10, %12, %cst_13 {dimension_numbers = #tpu.dot_dimension_numbers<[1], [0], [0], [1], [0, 0, 1, 1], [], []>} : vector<64x4xf32>, vector<4x128xf32>, vector<64x128xf32> -> vector<64x128xf32>
    %14 = arith.addf %7, %13 : vector<64x128xf32>
    %c0_14 = arith.constant 0 : index
    %c0_15 = arith.constant 0 : index
    %c1_16 = arith.constant 1 : index
    %c0_17 = arith.constant 0 : index
    %15 = vector.load %arg1[%c0_14, %c0_15, %c1_16, %c0_17] : memref<4x9x9x4xf32, #tpu.memory_space<vmem>>, vector<1x8x8x4xf32>
    %16 = vector.shape_cast %15 : vector<1x8x8x4xf32> to vector<8x8x4xf32>
    %17 = vector.shape_cast %16 : vector<8x8x4xf32> to vector<64x4xf32>
    %c2 = arith.constant 2 : index
    %c0_18 = arith.constant 0 : index
    %c0_19 = arith.constant 0 : index
    %18 = vector.load %arg3[%c2, %c0_18, %c0_19] : memref<9x4x128xf32, #tpu.memory_space<vmem>>, vector<1x4x128xf32>
    %19 = vector.shape_cast %18 : vector<1x4x128xf32> to vector<4x128xf32>
    %cst_20 = arith.constant dense<0.000000e+00> : vector<64x128xf32>
    %20 = tpu.matmul %17, %19, %cst_20 {dimension_numbers = #tpu.dot_dimension_numbers<[1], [0], [0], [1], [0, 0, 1, 1], [], []>} : vector<64x4xf32>, vector<4x128xf32>, vector<64x128xf32> -> vector<64x128xf32>
    %21 = arith.addf %14, %20 : vector<64x128xf32>
    %c2_21 = arith.constant 2 : index
    %c0_22 = arith.constant 0 : index
    %c0_23 = arith.constant 0 : index
    %c0_24 = arith.constant 0 : index
    %22 = vector.load %arg1[%c2_21, %c0_22, %c0_23, %c0_24] : memref<4x9x9x4xf32, #tpu.memory_space<vmem>>, vector<1x8x8x4xf32>
    %23 = vector.shape_cast %22 : vector<1x8x8x4xf32> to vector<8x8x4xf32>
    %24 = vector.shape_cast %23 : vector<8x8x4xf32> to vector<64x4xf32>
    %c3 = arith.constant 3 : index
    %c0_25 = arith.constant 0 : index
    %c0_26 = arith.constant 0 : index
    %25 = vector.load %arg3[%c3, %c0_25, %c0_26] : memref<9x4x128xf32, #tpu.memory_space<vmem>>, vector<1x4x128xf32>
    %26 = vector.shape_cast %25 : vector<1x4x128xf32> to vector<4x128xf32>
    %cst_27 = arith.constant dense<0.000000e+00> : vector<64x128xf32>
    %27 = tpu.matmul %24, %26, %cst_27 {dimension_numbers = #tpu.dot_dimension_numbers<[1], [0], [0], [1], [0, 0, 1, 1], [], []>} : vector<64x4xf32>, vector<4x128xf32>, vector<64x128xf32> -> vector<64x128xf32>
    %28 = arith.addf %21, %27 : vector<64x128xf32>
    %c3_28 = arith.constant 3 : index
    %c0_29 = arith.constant 0 : index
    %c0_30 = arith.constant 0 : index
    %c0_31 = arith.constant 0 : index
    %29 = vector.load %arg1[%c3_28, %c0_29, %c0_30, %c0_31] : memref<4x9x9x4xf32, #tpu.memory_space<vmem>>, vector<1x8x8x4xf32>
    %30 = vector.shape_cast %29 : vector<1x8x8x4xf32> to vector<8x8x4xf32>
    %31 = vector.shape_cast %30 : vector<8x8x4xf32> to vector<64x4xf32>
    %c4 = arith.constant 4 : index
    %c0_32 = arith.constant 0 : index
    %c0_33 = arith.constant 0 : index
    %32 = vector.load %arg3[%c4, %c0_32, %c0_33] : memref<9x4x128xf32, #tpu.memory_space<vmem>>, vector<1x4x128xf32>
    %33 = vector.shape_cast %32 : vector<1x4x128xf32> to vector<4x128xf32>
    %cst_34 = arith.constant dense<0.000000e+00> : vector<64x128xf32>
    %34 = tpu.matmul %31, %33, %cst_34 {dimension_numbers = #tpu.dot_dimension_numbers<[1], [0], [0], [1], [0, 0, 1, 1], [], []>} : vector<64x4xf32>, vector<4x128xf32>, vector<64x128xf32> -> vector<64x128xf32>
    %35 = arith.addf %28, %34 : vector<64x128xf32>
    %c2_35 = arith.constant 2 : index
    %c0_36 = arith.constant 0 : index
    %c1_37 = arith.constant 1 : index
    %c0_38 = arith.constant 0 : index
    %36 = vector.load %arg1[%c2_35, %c0_36, %c1_37, %c0_38] : memref<4x9x9x4xf32, #tpu.memory_space<vmem>>, vector<1x8x8x4xf32>
    %37 = vector.shape_cast %36 : vector<1x8x8x4xf32> to vector<8x8x4xf32>
    %38 = vector.shape_cast %37 : vector<8x8x4xf32> to vector<64x4xf32>
    %c5 = arith.constant 5 : index
    %c0_39 = arith.constant 0 : index
    %c0_40 = arith.constant 0 : index
    %39 = vector.load %arg3[%c5, %c0_39, %c0_40] : memref<9x4x128xf32, #tpu.memory_space<vmem>>, vector<1x4x128xf32>
    %40 = vector.shape_cast %39 : vector<1x4x128xf32> to vector<4x128xf32>
    %cst_41 = arith.constant dense<0.000000e+00> : vector<64x128xf32>
    %41 = tpu.matmul %38, %40, %cst_41 {dimension_numbers = #tpu.dot_dimension_numbers<[1], [0], [0], [1], [0, 0, 1, 1], [], []>} : vector<64x4xf32>, vector<4x128xf32>, vector<64x128xf32> -> vector<64x128xf32>
    %42 = arith.addf %35, %41 : vector<64x128xf32>
    %c0_42 = arith.constant 0 : index
    %c1_43 = arith.constant 1 : index
    %c0_44 = arith.constant 0 : index
    %c0_45 = arith.constant 0 : index
    %43 = vector.load %arg1[%c0_42, %c1_43, %c0_44, %c0_45] : memref<4x9x9x4xf32, #tpu.memory_space<vmem>>, vector<1x8x8x4xf32>
    %44 = vector.shape_cast %43 : vector<1x8x8x4xf32> to vector<8x8x4xf32>
    %45 = vector.shape_cast %44 : vector<8x8x4xf32> to vector<64x4xf32>
    %c6 = arith.constant 6 : index
    %c0_46 = arith.constant 0 : index
    %c0_47 = arith.constant 0 : index
    %46 = vector.load %arg3[%c6, %c0_46, %c0_47] : memref<9x4x128xf32, #tpu.memory_space<vmem>>, vector<1x4x128xf32>
    %47 = vector.shape_cast %46 : vector<1x4x128xf32> to vector<4x128xf32>
    %cst_48 = arith.constant dense<0.000000e+00> : vector<64x128xf32>
    %48 = tpu.matmul %45, %47, %cst_48 {dimension_numbers = #tpu.dot_dimension_numbers<[1], [0], [0], [1], [0, 0, 1, 1], [], []>} : vector<64x4xf32>, vector<4x128xf32>, vector<64x128xf32> -> vector<64x128xf32>
    %49 = arith.addf %42, %48 : vector<64x128xf32>
    %c1_49 = arith.constant 1 : index
    %c1_50 = arith.constant 1 : index
    %c0_51 = arith.constant 0 : index
    %c0_52 = arith.constant 0 : index
    %50 = vector.load %arg1[%c1_49, %c1_50, %c0_51, %c0_52] : memref<4x9x9x4xf32, #tpu.memory_space<vmem>>, vector<1x8x8x4xf32>
    %51 = vector.shape_cast %50 : vector<1x8x8x4xf32> to vector<8x8x4xf32>
    %52 = vector.shape_cast %51 : vector<8x8x4xf32> to vector<64x4xf32>
    %c7 = arith.constant 7 : index
    %c0_53 = arith.constant 0 : index
    %c0_54 = arith.constant 0 : index
    %53 = vector.load %arg3[%c7, %c0_53, %c0_54] : memref<9x4x128xf32, #tpu.memory_space<vmem>>, vector<1x4x128xf32>
    %54 = vector.shape_cast %53 : vector<1x4x128xf32> to vector<4x128xf32>
    %cst_55 = arith.constant dense<0.000000e+00> : vector<64x128xf32>
    %55 = tpu.matmul %52, %54, %cst_55 {dimension_numbers = #tpu.dot_dimension_numbers<[1], [0], [0], [1], [0, 0, 1, 1], [], []>} : vector<64x4xf32>, vector<4x128xf32>, vector<64x128xf32> -> vector<64x128xf32>
    %56 = arith.addf %49, %55 : vector<64x128xf32>
    %c0_56 = arith.constant 0 : index
    %c1_57 = arith.constant 1 : index
    %c1_58 = arith.constant 1 : index
    %c0_59 = arith.constant 0 : index
    %57 = vector.load %arg1[%c0_56, %c1_57, %c1_58, %c0_59] : memref<4x9x9x4xf32, #tpu.memory_space<vmem>>, vector<1x8x8x4xf32>
    %58 = vector.shape_cast %57 : vector<1x8x8x4xf32> to vector<8x8x4xf32>
    %59 = vector.shape_cast %58 : vector<8x8x4xf32> to vector<64x4xf32>
    %c8 = arith.constant 8 : index
    %c0_60 = arith.constant 0 : index
    %c0_61 = arith.constant 0 : index
    %60 = vector.load %arg3[%c8, %c0_60, %c0_61] : memref<9x4x128xf32, #tpu.memory_space<vmem>>, vector<1x4x128xf32>
    %61 = vector.shape_cast %60 : vector<1x4x128xf32> to vector<4x128xf32>
    %cst_62 = arith.constant dense<0.000000e+00> : vector<64x128xf32>
    %62 = tpu.matmul %59, %61, %cst_62 {dimension_numbers = #tpu.dot_dimension_numbers<[1], [0], [0], [1], [0, 0, 1, 1], [], []>} : vector<64x4xf32>, vector<4x128xf32>, vector<64x128xf32> -> vector<64x128xf32>
    %63 = arith.addf %56, %62 : vector<64x128xf32>
    %c0_63 = arith.constant 0 : index
    %c0_64 = arith.constant 0 : index
    %64 = vector.load %arg4[%c0_63, %c0_64] : memref<1x128xf32, #tpu.memory_space<vmem>>, vector<1x128xf32>
    %65 = vector.broadcast %64 : vector<1x128xf32> to vector<64x128xf32>
    %66 = arith.addf %63, %65 : vector<64x128xf32>
    %cst_65 = arith.constant 0.000000e+00 : f32
    %67 = vector.broadcast %cst_65 : f32 to vector<64x128xf32>
    %68 = arith.maximumf %66, %67 : vector<64x128xf32>
    %cst_66 = arith.constant 0.000000e+00 : f32
    %69 = vector.broadcast %cst_66 : f32 to vector<10x10x128xf32>
    %c0_67 = arith.constant 0 : index
    %c0_68 = arith.constant 0 : index
    %c0_69 = arith.constant 0 : index
    %70 = vector.load %arg10[%c0_67, %c0_68, %c0_69] : memref<10x10x128xf32, #tpu.memory_space<vmem>>, vector<10x10x128xf32>
    tpu.vector_store %arg10[%c0_67, %c0_68, %c0_69], %69 {strides = array<i32>} : memref<10x10x128xf32, #tpu.memory_space<vmem>>, vector<10x10x128xf32>,
    %71 = vector.shape_cast %68 : vector<64x128xf32> to vector<8x8x128xf32>
    %c1_70 = arith.constant 1 : index
    %c1_71 = arith.constant 1 : index
    %c0_72 = arith.constant 0 : index
    %72 = vector.load %arg10[%c1_70, %c1_71, %c0_72] : memref<10x10x128xf32, #tpu.memory_space<vmem>>, vector<8x8x128xf32>
    tpu.vector_store %arg10[%c1_70, %c1_71, %c0_72], %71 {strides = array<i32>} : memref<10x10x128xf32, #tpu.memory_space<vmem>>, vector<8x8x128xf32>,
    %cst_73 = arith.constant 0.000000e+00 : f32
    %73 = vector.broadcast %cst_73 : f32 to vector<64x128xf32>
    %c0_74 = arith.constant 0 : index
    %c0_75 = arith.constant 0 : index
    %c0_76 = arith.constant 0 : index
    %74 = vector.load %arg10[%c0_74, %c0_75, %c0_76] : memref<10x10x128xf32, #tpu.memory_space<vmem>>, vector<8x8x128xf32>
    %75 = vector.shape_cast %74 : vector<8x8x128xf32> to vector<64x128xf32>
    %c0_77 = arith.constant 0 : index
    %c0_78 = arith.constant 0 : index
    %c0_79 = arith.constant 0 : index
    %76 = vector.load %arg5[%c0_77, %c0_78, %c0_79] : memref<9x128x128xf32, #tpu.memory_space<vmem>>, vector<1x128x128xf32>
    %77 = vector.shape_cast %76 : vector<1x128x128xf32> to vector<128x128xf32>
    %cst_80 = arith.constant dense<0.000000e+00> : vector<64x128xf32>
    %78 = tpu.matmul %75, %77, %cst_80 {dimension_numbers = #tpu.dot_dimension_numbers<[1], [0], [0], [1], [0, 0, 1, 1], [], []>} : vector<64x128xf32>, vector<128x128xf32>, vector<64x128xf32> -> vector<64x128xf32>
    %79 = arith.addf %73, %78 : vector<64x128xf32>
    %c0_81 = arith.constant 0 : index
    %c1_82 = arith.constant 1 : index
    %c0_83 = arith.constant 0 : index
    %80 = vector.load %arg10[%c0_81, %c1_82, %c0_83] : memref<10x10x128xf32, #tpu.memory_space<vmem>>, vector<8x8x128xf32>
    %81 = vector.shape_cast %80 : vector<8x8x128xf32> to vector<64x128xf32>
    %c1_84 = arith.constant 1 : index
    %c0_85 = arith.constant 0 : index
    %c0_86 = arith.constant 0 : index
    %82 = vector.load %arg5[%c1_84, %c0_85, %c0_86] : memref<9x128x128xf32, #tpu.memory_space<vmem>>, vector<1x128x128xf32>
    %83 = vector.shape_cast %82 : vector<1x128x128xf32> to vector<128x128xf32>
    %cst_87 = arith.constant dense<0.000000e+00> : vector<64x128xf32>
    %84 = tpu.matmul %81, %83, %cst_87 {dimension_numbers = #tpu.dot_dimension_numbers<[1], [0], [0], [1], [0, 0, 1, 1], [], []>} : vector<64x128xf32>, vector<128x128xf32>, vector<64x128xf32> -> vector<64x128xf32>
    %85 = arith.addf %79, %84 : vector<64x128xf32>
    %c0_88 = arith.constant 0 : index
    %c2_89 = arith.constant 2 : index
    %c0_90 = arith.constant 0 : index
    %86 = vector.load %arg10[%c0_88, %c2_89, %c0_90] : memref<10x10x128xf32, #tpu.memory_space<vmem>>, vector<8x8x128xf32>
    %87 = vector.shape_cast %86 : vector<8x8x128xf32> to vector<64x128xf32>
    %c2_91 = arith.constant 2 : index
    %c0_92 = arith.constant 0 : index
    %c0_93 = arith.constant 0 : index
    %88 = vector.load %arg5[%c2_91, %c0_92, %c0_93] : memref<9x128x128xf32, #tpu.memory_space<vmem>>, vector<1x128x128xf32>
    %89 = vector.shape_cast %88 : vector<1x128x128xf32> to vector<128x128xf32>
    %cst_94 = arith.constant dense<0.000000e+00> : vector<64x128xf32>
    %90 = tpu.matmul %87, %89, %cst_94 {dimension_numbers = #tpu.dot_dimension_numbers<[1], [0], [0], [1], [0, 0, 1, 1], [], []>} : vector<64x128xf32>, vector<128x128xf32>, vector<64x128xf32> -> vector<64x128xf32>
    %91 = arith.addf %85, %90 : vector<64x128xf32>
    %c1_95 = arith.constant 1 : index
    %c0_96 = arith.constant 0 : index
    %c0_97 = arith.constant 0 : index
    %92 = vector.load %arg10[%c1_95, %c0_96, %c0_97] : memref<10x10x128xf32, #tpu.memory_space<vmem>>, vector<8x8x128xf32>
    %93 = vector.shape_cast %92 : vector<8x8x128xf32> to vector<64x128xf32>
    %c3_98 = arith.constant 3 : index
    %c0_99 = arith.constant 0 : index
    %c0_100 = arith.constant 0 : index
    %94 = vector.load %arg5[%c3_98, %c0_99, %c0_100] : memref<9x128x128xf32, #tpu.memory_space<vmem>>, vector<1x128x128xf32>
    %95 = vector.shape_cast %94 : vector<1x128x128xf32> to vector<128x128xf32>
    %cst_101 = arith.constant dense<0.000000e+00> : vector<64x128xf32>
    %96 = tpu.matmul %93, %95, %cst_101 {dimension_numbers = #tpu.dot_dimension_numbers<[1], [0], [0], [1], [0, 0, 1, 1], [], []>} : vector<64x128xf32>, vector<128x128xf32>, vector<64x128xf32> -> vector<64x128xf32>
    %97 = arith.addf %91, %96 : vector<64x128xf32>
    %c1_102 = arith.constant 1 : index
    %c1_103 = arith.constant 1 : index
    %c0_104 = arith.constant 0 : index
    %98 = vector.load %arg10[%c1_102, %c1_103, %c0_104] : memref<10x10x128xf32, #tpu.memory_space<vmem>>, vector<8x8x128xf32>
    %99 = vector.shape_cast %98 : vector<8x8x128xf32> to vector<64x128xf32>
    %c4_105 = arith.constant 4 : index
    %c0_106 = arith.constant 0 : index
    %c0_107 = arith.constant 0 : index
    %100 = vector.load %arg5[%c4_105, %c0_106, %c0_107] : memref<9x128x128xf32, #tpu.memory_space<vmem>>, vector<1x128x128xf32>
    %101 = vector.shape_cast %100 : vector<1x128x128xf32> to vector<128x128xf32>
    %cst_108 = arith.constant dense<0.000000e+00> : vector<64x128xf32>
    %102 = tpu.matmul %99, %101, %cst_108 {dimension_numbers = #tpu.dot_dimension_numbers<[1], [0], [0], [1], [0, 0, 1, 1], [], []>} : vector<64x128xf32>, vector<128x128xf32>, vector<64x128xf32> -> vector<64x128xf32>
    %103 = arith.addf %97, %102 : vector<64x128xf32>
    %c1_109 = arith.constant 1 : index
    %c2_110 = arith.constant 2 : index
    %c0_111 = arith.constant 0 : index
    %104 = vector.load %arg10[%c1_109, %c2_110, %c0_111] : memref<10x10x128xf32, #tpu.memory_space<vmem>>, vector<8x8x128xf32>
    %105 = vector.shape_cast %104 : vector<8x8x128xf32> to vector<64x128xf32>
    %c5_112 = arith.constant 5 : index
    %c0_113 = arith.constant 0 : index
    %c0_114 = arith.constant 0 : index
    %106 = vector.load %arg5[%c5_112, %c0_113, %c0_114] : memref<9x128x128xf32, #tpu.memory_space<vmem>>, vector<1x128x128xf32>
    %107 = vector.shape_cast %106 : vector<1x128x128xf32> to vector<128x128xf32>
    %cst_115 = arith.constant dense<0.000000e+00> : vector<64x128xf32>
    %108 = tpu.matmul %105, %107, %cst_115 {dimension_numbers = #tpu.dot_dimension_numbers<[1], [0], [0], [1], [0, 0, 1, 1], [], []>} : vector<64x128xf32>, vector<128x128xf32>, vector<64x128xf32> -> vector<64x128xf32>
    %109 = arith.addf %103, %108 : vector<64x128xf32>
    %c2_116 = arith.constant 2 : index
    %c0_117 = arith.constant 0 : index
    %c0_118 = arith.constant 0 : index
    %110 = vector.load %arg10[%c2_116, %c0_117, %c0_118] : memref<10x10x128xf32, #tpu.memory_space<vmem>>, vector<8x8x128xf32>
    %111 = vector.shape_cast %110 : vector<8x8x128xf32> to vector<64x128xf32>
    %c6_119 = arith.constant 6 : index
    %c0_120 = arith.constant 0 : index
    %c0_121 = arith.constant 0 : index
    %112 = vector.load %arg5[%c6_119, %c0_120, %c0_121] : memref<9x128x128xf32, #tpu.memory_space<vmem>>, vector<1x128x128xf32>
    %113 = vector.shape_cast %112 : vector<1x128x128xf32> to vector<128x128xf32>
    %cst_122 = arith.constant dense<0.000000e+00> : vector<64x128xf32>
    %114 = tpu.matmul %111, %113, %cst_122 {dimension_numbers = #tpu.dot_dimension_numbers<[1], [0], [0], [1], [0, 0, 1, 1], [], []>} : vector<64x128xf32>, vector<128x128xf32>, vector<64x128xf32> -> vector<64x128xf32>
    %115 = arith.addf %109, %114 : vector<64x128xf32>
    %c2_123 = arith.constant 2 : index
    %c1_124 = arith.constant 1 : index
    %c0_125 = arith.constant 0 : index
    %116 = vector.load %arg10[%c2_123, %c1_124, %c0_125] : memref<10x10x128xf32, #tpu.memory_space<vmem>>, vector<8x8x128xf32>
    %117 = vector.shape_cast %116 : vector<8x8x128xf32> to vector<64x128xf32>
    %c7_126 = arith.constant 7 : index
    %c0_127 = arith.constant 0 : index
    %c0_128 = arith.constant 0 : index
    %118 = vector.load %arg5[%c7_126, %c0_127, %c0_128] : memref<9x128x128xf32, #tpu.memory_space<vmem>>, vector<1x128x128xf32>
    %119 = vector.shape_cast %118 : vector<1x128x128xf32> to vector<128x128xf32>
    %cst_129 = arith.constant dense<0.000000e+00> : vector<64x128xf32>
    %120 = tpu.matmul %117, %119, %cst_129 {dimension_numbers = #tpu.dot_dimension_numbers<[1], [0], [0], [1], [0, 0, 1, 1], [], []>} : vector<64x128xf32>, vector<128x128xf32>, vector<64x128xf32> -> vector<64x128xf32>
    %121 = arith.addf %115, %120 : vector<64x128xf32>
    %c2_130 = arith.constant 2 : index
    %c2_131 = arith.constant 2 : index
    %c0_132 = arith.constant 0 : index
    %122 = vector.load %arg10[%c2_130, %c2_131, %c0_132] : memref<10x10x128xf32, #tpu.memory_space<vmem>>, vector<8x8x128xf32>
    %123 = vector.shape_cast %122 : vector<8x8x128xf32> to vector<64x128xf32>
    %c8_133 = arith.constant 8 : index
    %c0_134 = arith.constant 0 : index
    %c0_135 = arith.constant 0 : index
    %124 = vector.load %arg5[%c8_133, %c0_134, %c0_135] : memref<9x128x128xf32, #tpu.memory_space<vmem>>, vector<1x128x128xf32>
    %125 = vector.shape_cast %124 : vector<1x128x128xf32> to vector<128x128xf32>
    %cst_136 = arith.constant dense<0.000000e+00> : vector<64x128xf32>
    %126 = tpu.matmul %123, %125, %cst_136 {dimension_numbers = #tpu.dot_dimension_numbers<[1], [0], [0], [1], [0, 0, 1, 1], [], []>} : vector<64x128xf32>, vector<128x128xf32>, vector<64x128xf32> -> vector<64x128xf32>
    %127 = arith.addf %121, %126 : vector<64x128xf32>
    %c0_137 = arith.constant 0 : index
    %c0_138 = arith.constant 0 : index
    %128 = vector.load %arg6[%c0_137, %c0_138] : memref<1x128xf32, #tpu.memory_space<vmem>>, vector<1x128xf32>
    %129 = vector.broadcast %128 : vector<1x128xf32> to vector<64x128xf32>
    %130 = arith.addf %127, %129 : vector<64x128xf32>
    %c0_139 = arith.constant 0 : index
    %c0_140 = arith.constant 0 : index
    %c0_141 = arith.constant 0 : index
    %c0_142 = arith.constant 0 : index
    %131 = vector.load %arg2[%c0_139, %c0_140, %c0_141, %c0_142] : memref<1x8x8x4xf32, #tpu.memory_space<vmem>>, vector<1x8x8x4xf32>
    %132 = vector.shape_cast %131 : vector<1x8x8x4xf32> to vector<8x8x4xf32>
    %133 = vector.shape_cast %132 : vector<8x8x4xf32> to vector<64x4xf32>
    %c0_143 = arith.constant 0 : index
    %c0_144 = arith.constant 0 : index
    %c0_145 = arith.constant 0 : index
    %134 = vector.load %arg7[%c0_143, %c0_144, %c0_145] : memref<1x4x128xf32, #tpu.memory_space<vmem>>, vector<1x4x128xf32>
    %135 = vector.shape_cast %134 : vector<1x4x128xf32> to vector<4x128xf32>
    %cst_146 = arith.constant dense<0.000000e+00> : vector<64x128xf32>
    %136 = tpu.matmul %133, %135, %cst_146 {dimension_numbers = #tpu.dot_dimension_numbers<[1], [0], [0], [1], [0, 0, 1, 1], [], []>} : vector<64x4xf32>, vector<4x128xf32>, vector<64x128xf32> -> vector<64x128xf32>
    %c0_147 = arith.constant 0 : index
    %c0_148 = arith.constant 0 : index
    %137 = vector.load %arg8[%c0_147, %c0_148] : memref<1x128xf32, #tpu.memory_space<vmem>>, vector<1x128xf32>
    %138 = vector.broadcast %137 : vector<1x128xf32> to vector<64x128xf32>
    %139 = arith.addf %136, %138 : vector<64x128xf32>
    %140 = arith.addf %130, %139 : vector<64x128xf32>
    %cst_149 = arith.constant 0.000000e+00 : f32
    %141 = vector.broadcast %cst_149 : f32 to vector<64x128xf32>
    %142 = arith.maximumf %140, %141 : vector<64x128xf32>
    %143 = vector.shape_cast %142 : vector<64x128xf32> to vector<1x8x8x128xf32>
    %c0_150 = arith.constant 0 : index
    %c0_151 = arith.constant 0 : index
    %c0_152 = arith.constant 0 : index
    %c0_153 = arith.constant 0 : index
    %144 = vector.load %arg9[%c0_150, %c0_151, %c0_152, %c0_153] : memref<1x8x8x128xf32, #tpu.memory_space<vmem>>, vector<1x8x8x128xf32>
    tpu.vector_store %arg9[%c0_150, %c0_151, %c0_152, %c0_153], %143 {strides = array<i32>} : memref<1x8x8x128xf32, #tpu.memory_space<vmem>>, vector<1x8x8x128xf32>,
    return
  }
  func.func @transform_0(%arg0: i32) -> (i32, i32, i32, i32) {
    %c0_i32 = arith.constant 0 : i32
    %c0_i32_0 = arith.constant 0 : i32
    %c0_i32_1 = arith.constant 0 : i32
    %c0_i32_2 = arith.constant 0 : i32
    return %arg0, %c0_i32, %c0_i32_0, %c0_i32_1 : i32, i32, i32, i32
  }
  func.func @transform_1(%arg0: i32) -> (i32, i32, i32, i32) {
    %c0_i32 = arith.constant 0 : i32
    %c0_i32_0 = arith.constant 0 : i32
    %c0_i32_1 = arith.constant 0 : i32
    %c0_i32_2 = arith.constant 0 : i32
    return %arg0, %c0_i32, %c0_i32_0, %c0_i32_1 : i32, i32, i32, i32
  }
  func.func @transform_2(%arg0: i32) -> (i32, i32, i32) {
    %c0_i32 = arith.constant 0 : i32
    %c0_i32_0 = arith.constant 0 : i32
    %c0_i32_1 = arith.constant 0 : i32
    %c0_i32_2 = arith.constant 0 : i32
    return %c0_i32, %c0_i32_0, %c0_i32_1 : i32, i32, i32
  }
  func.func @transform_3(%arg0: i32) -> (i32, i32) {
    %c0_i32 = arith.constant 0 : i32
    %c0_i32_0 = arith.constant 0 : i32
    %c0_i32_1 = arith.constant 0 : i32
    return %c0_i32, %c0_i32_0 : i32, i32
  }
  func.func @transform_4(%arg0: i32) -> (i32, i32, i32) {
    %c0_i32 = arith.constant 0 : i32
    %c0_i32_0 = arith.constant 0 : i32
    %c0_i32_1 = arith.constant 0 : i32
    %c0_i32_2 = arith.constant 0 : i32
    return %c0_i32, %c0_i32_0, %c0_i32_1 : i32, i32, i32
  }
  func.func @transform_5(%arg0: i32) -> (i32, i32) {
    %c0_i32 = arith.constant 0 : i32
    %c0_i32_0 = arith.constant 0 : i32
    %c0_i32_1 = arith.constant 0 : i32
    return %c0_i32, %c0_i32_0 : i32, i32
  }
  func.func @transform_6(%arg0: i32) -> (i32, i32, i32) {
    %c0_i32 = arith.constant 0 : i32
    %c0_i32_0 = arith.constant 0 : i32
    %c0_i32_1 = arith.constant 0 : i32
    %c0_i32_2 = arith.constant 0 : i32
    return %c0_i32, %c0_i32_0, %c0_i32_1 : i32, i32, i32
  }
  func.func @transform_7(%arg0: i32) -> (i32, i32) {
    %c0_i32 = arith.constant 0 : i32
    %c0_i32_0 = arith.constant 0 : i32
    %c0_i32_1 = arith.constant 0 : i32
    return %c0_i32, %c0_i32_0 : i32, i32
  }
  func.func @transform_8(%arg0: i32) -> (i32, i32, i32, i32) {
    %c0_i32 = arith.constant 0 : i32
    %c0_i32_0 = arith.constant 0 : i32
    %c0_i32_1 = arith.constant 0 : i32
    %c0_i32_2 = arith.constant 0 : i32
    return %arg0, %c0_i32, %c0_i32_0, %c0_i32_1 : i32, i32, i32, i32
  }
}

</mosaic_0001>

<llo_original>
// kernel: residual_block_forward.1
$region0: #{residual_block_forward.1}
  #allocation0 [shape = 'u32[]', space=smem, size = 0x4, offset = 0x4, fixed_abs, tag = 'smem constant byte address 0x4 - core index']
  #allocation1 [shape = 'u32[72,128]{1,0:T(1,128)}', space=vmem, size = 0x9000, scoped, tag = 'internal scratch']
  #allocation2 [shape = 'f32[10,10,128]{2,1,0:T(8,128)}', space=vmem, size = 0x14000, scoped, tag = 'scratch operand']
  %s0 = inlined_call_operand.vmem [shape: f32[8,9,9,4], index: 0, kind: input, shape index: {}]
  %s1 = inlined_call_operand.vmem [shape: f32[2,8,8,4], index: 1, kind: input, shape index: {}]
  %s2 = inlined_call_operand.vmem [shape: f32[9,4,128], index: 2, kind: input, shape index: {}]
  %s3 = inlined_call_operand.vmem [shape: f32[1,128], index: 3, kind: input, shape index: {}]
  %s4 = inlined_call_operand.vmem [shape: f32[9,128,128], index: 4, kind: input, shape index: {}]
  %s5 = inlined_call_operand.vmem [shape: f32[1,128], index: 5, kind: input, shape index: {}]
  %s6 = inlined_call_operand.vmem [shape: f32[1,4,128], index: 6, kind: input, shape index: {}]
  %s7 = inlined_call_operand.vmem [shape: f32[1,128], index: 7, kind: input, shape index: {}]
  %s8 = inlined_call_operand.vmem [shape: f32[2,8,8,128], index: 8, kind: output, shape index: {}]
  %s9 = sld [smem:[#allocation0]]
  $region65: #{residual_block_forward.1} parent=0
    _
  %s11 = ssub.s32 1, %s9
  %s12 = scalar_select 0, %s11, %s9
  loop: start=0, step=1, limit=4
  $region2: #{residual_block_forward.1} parent=0 // loop_pre_header
    _
  $region3: #{residual_block_forward.1} parent=0 // loop_header
    %s14 = sphi 0, %s18
    %p15 = scmp.ge.s32.totalorder %s14, 4
    %s24 = sphi 0, %s26
    %s27 = sphi 0, %s24
    %s28 = sphi 0, %s27
    %s44 = sphi 0, %s28
    %s50 = sphi 0, %s52
    %s53 = sphi 0, %s50
    %s54 = sphi 0, %s53
    %s70 = sphi 0, %s54
    %s74 = sphi 0, %s74
    %s76 = sphi 0, %s74
    %s77 = sphi 0, %s76
    %s91 = sphi 0, %s77
    %s95 = sphi 0, %s95
    %s97 = sphi 0, %s95
    %s98 = sphi 0, %s97
    %s112 = sphi 0, %s98
    %s116 = sphi 0, %s116
    %s118 = sphi 0, %s116
    %s119 = sphi 0, %s118
    %s133 = sphi 0, %s119
    %s137 = sphi 0, %s137
    %s139 = sphi 0, %s137
    %s140 = sphi 0, %s139
    %s154 = sphi 0, %s140
    %s158 = sphi 0, %s158
    %s160 = sphi 0, %s158
    %s161 = sphi 0, %s160
    %s175 = sphi 0, %s161
    %s179 = sphi 0, %s179
    %s181 = sphi 0, %s179
    %s182 = sphi 0, %s181
    %s196 = sphi 0, %s182
    %s202 = sphi 0, %s204
    %s205 = sphi 0, %s202
    %s206 = sphi 0, %s205
    %s222 = sphi 0, %s206
  $region4: #{residual_block_forward.1} parent=0 // loop_header_branch
    %17 = sbr.rel (%p15) target = $region8
  $region5: #{residual_block_forward.1} parent=0 // loop_body
    %s19 = ssub.s32 %s14, 1
    %s20 = ssub.s32 %s14, 2
    %s21 = sadd.s32 %s14, 1
    %s22 = ssub.s32 %s14, %s21
    %p23 = scmp.eq.s32.totalorder %s22, 0
    %s25 = sadd.s32 %s24, 1
    %s26 = scalar_select %p23, %s24, %s25
    %p29 = pneg %p23
    %p30 = scmp.eq.s32.totalorder %s14, 1
    %p31 = por %p29, %p30
    %p32 = scmp.ne.s32.totalorder %s24, %s27
    %p33 = scmp.eq.s32.totalorder %s14, 0
    %p34 = por %p32, %p33
    %p35 = scmp.ne.s32.totalorder %s24, %s27
    %p36 = scmp.eq.s32.totalorder %s19, 1
    %p37 = por %p35, %p36
    %p38 = scmp.ne.s32.totalorder %s27, %s28
    %p39 = scmp.eq.s32.totalorder %s19, 0
    %p40 = por %p38, %p39
    %p41 = scmp.ne.s32.totalorder %s27, %s28
    %p42 = scmp.eq.s32.totalorder %s20, 1
    %p43 = por %p41, %p42
    %p45 = scmp.ne.s32.totalorder %s28, %s44
    %p46 = scmp.eq.s32.totalorder %s20, 0
    %p47 = por %p45, %p46
    %s48 = ssub.s32 %s14, %s21
    %p49 = scmp.eq.s32.totalorder %s48, 0
    %s51 = sadd.s32 %s50, 1
    %s52 = scalar_select %p49, %s50, %s51
    %p55 = pneg %p49
    %p56 = scmp.eq.s32.totalorder %s14, 1
    %p57 = por %p55, %p56
    %p58 = scmp.ne.s32.totalorder %s50, %s53
    %p59 = scmp.eq.s32.totalorder %s14, 0
    %p60 = por %p58, %p59
    %p61 = scmp.ne.s32.totalorder %s50, %s53
    %p62 = scmp.eq.s32.totalorder %s19, 1
    %p63 = por %p61, %p62
    %p64 = scmp.ne.s32.totalorder %s53, %s54
    %p65 = scmp.eq.s32.totalorder %s19, 0
    %p66 = por %p64, %p65
    %p67 = scmp.ne.s32.totalorder %s53, %s54
    %p68 = scmp.eq.s32.totalorder %s20, 1
    %p69 = por %p67, %p68
    %p71 = scmp.ne.s32.totalorder %s54, %s70
    %p72 = scmp.eq.s32.totalorder %s20, 0
    %p73 = por %p71, %p72
    %s75 = sadd.s32 %s74, 1
    %p78 = scmp.eq.s32.totalorder %s14, 1
    %p79 = scmp.ne.s32.totalorder %s74, %s76
    %p80 = scmp.eq.s32.totalorder %s14, 0
    %p81 = por %p79, %p80
    %p82 = scmp.ne.s32.totalorder %s74, %s76
    %p83 = scmp.eq.s32.totalorder %s19, 1
    %p84 = por %p82, %p83
    %p85 = scmp.ne.s32.totalorder %s76, %s77
    %p86 = scmp.eq.s32.totalorder %s19, 0
    %p87 = por %p85, %p86
    %p88 = scmp.ne.s32.totalorder %s76, %s77
    %p89 = scmp.eq.s32.totalorder %s20, 1
    %p90 = por %p88, %p89
    %p92 = scmp.ne.s32.totalorder %s77, %s91
    %p93 = scmp.eq.s32.totalorder %s20, 0
    %p94 = por %p92, %p93
    %s96 = sadd.s32 %s95, 1
    %p99 = scmp.eq.s32.totalorder %s14, 1
    %p100 = scmp.ne.s32.totalorder %s95, %s97
    %p101 = scmp.eq.s32.totalorder %s14, 0
    %p102 = por %p100, %p101
    %p103 = scmp.ne.s32.totalorder %s95, %s97
    %p104 = scmp.eq.s32.totalorder %s19, 1
    %p105 = por %p103, %p104
    %p106 = scmp.ne.s32.totalorder %s97, %s98
    %p107 = scmp.eq.s32.totalorder %s19, 0
    %p108 = por %p106, %p107
    %p109 = scmp.ne.s32.totalorder %s97, %s98
    %p110 = scmp.eq.s32.totalorder %s20, 1
    %p111 = por %p109, %p110
    %p113 = scmp.ne.s32.totalorder %s98, %s112
    %p114 = scmp.eq.s32.totalorder %s20, 0
    %p115 = por %p113, %p114
    %s117 = sadd.s32 %s116, 1
    %p120 = scmp.eq.s32.totalorder %s14, 1
    %p121 = scmp.ne.s32.totalorder %s116, %s118
    %p122 = scmp.eq.s32.totalorder %s14, 0
    %p123 = por %p121, %p122
    %p124 = scmp.ne.s32.totalorder %s116, %s118
    %p125 = scmp.eq.s32.totalorder %s19, 1
    %p126 = por %p124, %p125
    %p127 = scmp.ne.s32.totalorder %s118, %s119
    %p128 = scmp.eq.s32.totalorder %s19, 0
    %p129 = por %p127, %p128
    %p130 = scmp.ne.s32.totalorder %s118, %s119
    %p131 = scmp.eq.s32.totalorder %s20, 1
    %p132 = por %p130, %p131
    %p134 = scmp.ne.s32.totalorder %s119, %s133
    %p135 = scmp.eq.s32.totalorder %s20, 0
    %p136 = por %p134, %p135
    %s138 = sadd.s32 %s137, 1
    %p141 = scmp.eq.s32.totalorder %s14, 1
    %p142 = scmp.ne.s32.totalorder %s137, %s139
    %p143 = scmp.eq.s32.totalorder %s14, 0
    %p144 = por %p142, %p143
    %p145 = scmp.ne.s32.totalorder %s137, %s139
    %p146 = scmp.eq.s32.totalorder %s19, 1
    %p147 = por %p145, %p146
    %p148 = scmp.ne.s32.totalorder %s139, %s140
    %p149 = scmp.eq.s32.totalorder %s19, 0
    %p150 = por %p148, %p149
    %p151 = scmp.ne.s32.totalorder %s139, %s140
    %p152 = scmp.eq.s32.totalorder %s20, 1
    %p153 = por %p151, %p152
    %p155 = scmp.ne.s32.totalorder %s140, %s154
    %p156 = scmp.eq.s32.totalorder %s20, 0
    %p157 = por %p155, %p156
    %s159 = sadd.s32 %s158, 1
    %p162 = scmp.eq.s32.totalorder %s14, 1
    %p163 = scmp.ne.s32.totalorder %s158, %s160
    %p164 = scmp.eq.s32.totalorder %s14, 0
    %p165 = por %p163, %p164
    %p166 = scmp.ne.s32.totalorder %s158, %s160
    %p167 = scmp.eq.s32.totalorder %s19, 1
    %p168 = por %p166, %p167
    %p169 = scmp.ne.s32.totalorder %s160, %s161
    %p170 = scmp.eq.s32.totalorder %s19, 0
    %p171 = por %p169, %p170
    %p172 = scmp.ne.s32.totalorder %s160, %s161
    %p173 = scmp.eq.s32.totalorder %s20, 1
    %p174 = por %p172, %p173
    %p176 = scmp.ne.s32.totalorder %s161, %s175
    %p177 = scmp.eq.s32.totalorder %s20, 0
    %p178 = por %p176, %p177
    %s180 = sadd.s32 %s179, 1
    %p183 = scmp.eq.s32.totalorder %s14, 1
    %p184 = scmp.ne.s32.totalorder %s179, %s181
    %p185 = scmp.eq.s32.totalorder %s14, 0
    %p186 = por %p184, %p185
    %p187 = scmp.ne.s32.totalorder %s179, %s181
    %p188 = scmp.eq.s32.totalorder %s19, 1
    %p189 = por %p187, %p188
    %p190 = scmp.ne.s32.totalorder %s181, %s182
    %p191 = scmp.eq.s32.totalorder %s19, 0
    %p192 = por %p190, %p191
    %p193 = scmp.ne.s32.totalorder %s181, %s182
    %p194 = scmp.eq.s32.totalorder %s20, 1
    %p195 = por %p193, %p194
    %p197 = scmp.ne.s32.totalorder %s182, %s196
    %p198 = scmp.eq.s32.totalorder %s20, 0
    %p199 = por %p197, %p198
    %s200 = ssub.s32 %s14, %s21
    %p201 = scmp.eq.s32.totalorder %s200, 0
    %s203 = sadd.s32 %s202, 1
    %s204 = scalar_select %p201, %s202, %s203
    %p207 = pneg %p201
    %p208 = scmp.eq.s32.totalorder %s14, 1
    %p209 = por %p207, %p208
    %p210 = scmp.ne.s32.totalorder %s202, %s205
    %p211 = scmp.eq.s32.totalorder %s14, 0
    %p212 = por %p210, %p211
    %p213 = scmp.ne.s32.totalorder %s202, %s205
    %p214 = scmp.eq.s32.totalorder %s19, 1
    %p215 = por %p213, %p214
    %p216 = scmp.ne.s32.totalorder %s205, %s206
    %p217 = scmp.eq.s32.totalorder %s19, 0
    %p218 = por %p216, %p217
    %p219 = scmp.ne.s32.totalorder %s205, %s206
    %p220 = scmp.eq.s32.totalorder %s20, 1
    %p221 = por %p219, %p220
    %p223 = scmp.ne.s32.totalorder %s206, %s222
    %p224 = scmp.eq.s32.totalorder %s20, 0
    %p225 = por %p223, %p224
    %p226 = scmp.le.s32.totalorder 1, %s14
    %p227 = scmp.lt.s32.totalorder %s14, 3
    %p228 = pnand %p226, %p227
    %p229 = pneg %p228
    // Predicated region
    $region9: #{residual_block_forward.1} parent=5 // pred_check
      _
    $region10: #{residual_block_forward.1} parent=5 // pred_check_branch
      %231 = sbr.rel (%p228) target = $region12
    $region11: #{residual_block_forward.1} parent=5 // pred_region
      %s232 = ssub.s32 %s14, 1
      // Predicated region
      $region13: #{residual_block_forward.1} parent=11 // pred_check
        %p233 = pneg %p87
      $region14: #{residual_block_forward.1} parent=11 // pred_check_branch
        %235 = sbr.rel (%p233) target = $region16
      $region15: #{residual_block_forward.1} parent=11 // pred_region
        _
      $region16: #{residual_block_forward.1} parent=11 // pred_fallthru
        _
      // Predicated region
      $region17: #{residual_block_forward.1} parent=11 // pred_check
        %p236 = pneg %p108
      $region18: #{residual_block_forward.1} parent=11 // pred_check_branch
        %238 = sbr.rel (%p236) target = $region20
      $region19: #{residual_block_forward.1} parent=11 // pred_region
        _
      $region20: #{residual_block_forward.1} parent=11 // pred_fallthru
        _
      // Predicated region
      $region21: #{residual_block_forward.1} parent=11 // pred_check
        %p239 = pneg %p129
      $region22: #{residual_block_forward.1} parent=11 // pred_check_branch
        %241 = sbr.rel (%p239) target = $region24
      $region23: #{residual_block_forward.1} parent=11 // pred_region
        _
      $region24: #{residual_block_forward.1} parent=11 // pred_fallthru
        _
      // Predicated region
      $region25: #{residual_block_forward.1} parent=11 // pred_check
        %p242 = pneg %p150
      $region26: #{residual_block_forward.1} parent=11 // pred_check_branch
        %244 = sbr.rel (%p242) target = $region28
      $region27: #{residual_block_forward.1} parent=11 // pred_region
        _
      $region28: #{residual_block_forward.1} parent=11 // pred_fallthru
        _
      // Predicated region
      $region29: #{residual_block_forward.1} parent=11 // pred_check
        %p245 = pneg %p171
      $region30: #{residual_block_forward.1} parent=11 // pred_check_branch
        %247 = sbr.rel (%p245) target = $region32
      $region31: #{residual_block_forward.1} parent=11 // pred_region
        _
      $region32: #{residual_block_forward.1} parent=11 // pred_fallthru
        _
      // Predicated region
      $region33: #{residual_block_forward.1} parent=11 // pred_check
        %p248 = pneg %p192
      $region34: #{residual_block_forward.1} parent=11 // pred_check_branch
        %250 = sbr.rel (%p248) target = $region36
      $region35: #{residual_block_forward.1} parent=11 // pred_region
        _
      $region36: #{residual_block_forward.1} parent=11 // pred_fallthru
        _
    $region12: #{residual_block_forward.1} parent=5 // pred_fallthru
      _
    %p251 = scmp.lt.s32.totalorder %s14, 2
    // Predicated region
    $region37: #{residual_block_forward.1} parent=5 // pred_check
      %p252 = pneg %p251
    $region38: #{residual_block_forward.1} parent=5 // pred_check_branch
      %254 = sbr.rel (%p252) target = $region40
    $region39: #{residual_block_forward.1} parent=5 // pred_region
      // Predicated region
      $region41: #{residual_block_forward.1} parent=39 // pred_check
        %p255 = pneg %p34
      $region42: #{residual_block_forward.1} parent=39 // pred_check_branch
        %257 = sbr.rel (%p255) target = $region44
      $region43: #{residual_block_forward.1} parent=39 // pred_region
        %s258 = smul.u32 4, %s14
        %p259 = scmp.lt.s32.totalorder %s258, 7
        %s260 = scalar_select %p259, %s258, 7
        %s261 = smul.addr %s260, 18
        %s262 = smul.addr %s261, 8
        %s263 = scalar_lea.vmem %s0, %s262
        %s264 = smul.u32 4, %s14
      $region44: #{residual_block_forward.1} parent=39 // pred_fallthru
        _
      // Predicated region
      $region45: #{residual_block_forward.1} parent=39 // pred_check
        %p265 = pneg %p60
      $region46: #{residual_block_forward.1} parent=39 // pred_check_branch
        %267 = sbr.rel (%p265) target = $region48
      $region47: #{residual_block_forward.1} parent=39 // pred_region
        %p268 = scmp.lt.s32.totalorder %s14, 1
        %s269 = scalar_select %p268, %s14, 1
        %s270 = smul.addr %s269, 8
        %s271 = smul.addr %s270, 8
        %s272 = scalar_lea.vmem %s1, %s271
      $region48: #{residual_block_forward.1} parent=39 // pred_fallthru
        _
    $region40: #{residual_block_forward.1} parent=5 // pred_fallthru
      _
    %p273 = scmp.le.s32.totalorder 1, %s14
    %p274 = scmp.lt.s32.totalorder %s14, 3
    %p275 = pnand %p273, %p274
    %p276 = pneg %p275
    // Predicated region
    $region49: #{residual_block_forward.1} parent=5 // pred_check
      _
    $region50: #{residual_block_forward.1} parent=5 // pred_check_branch
      %278 = sbr.rel (%p275) target = $region52
    $region51: #{residual_block_forward.1} parent=5 // pred_region
      %s279 = ssub.s32 %s14, 1
      %s280 = smul.u32 4, %s19
      %p281 = scmp.lt.s32.totalorder %s280, 7
      %s282 = scalar_select %p281, %s280, 7
      %s283 = smul.addr %s282, 18
      %s284 = smul.addr %s283, 8
      %s285 = scalar_lea.vmem %s0, %s284
      %p286 = pneg %p40
      %p287 = pneg %p37
      %p288 = scmp.lt.s32.totalorder %s19, 1
      %s289 = scalar_select %p288, %s19, 1
      %s290 = smul.addr %s289, 8
      %s291 = smul.addr %s290, 8
      %s292 = scalar_lea.vmem %s1, %s291
      %p293 = pneg %p66
      %p294 = pneg %p63
      %p295 = pneg %p87
      %p296 = pneg %p84
      %p297 = pneg %p108
      %p298 = pneg %p105
      %p299 = pneg %p129
      %p300 = pneg %p126
      %p301 = pneg %p150
      %p302 = pneg %p147
      %p303 = pneg %p171
      %p304 = pneg %p168
      %p305 = pneg %p192
      %p306 = pneg %p189
      %p307 = pneg %p218
      %p308 = pneg %p215
      %p309 = scmp.lt.s32.totalorder %s19, 1
      %s310 = scalar_select %p309, %s19, 1
      %s311 = smul.addr %s310, 8
      %s312 = smul.addr %s311, 8
      %s313 = scalar_lea.vmem %s8, %s312
      %s314 = smul.u32 4, %s19
      %p315 = scmp.lt.s32.totalorder %s314, 7
      %s316 = scalar_select %p315, %s314, 7
      %s317 = smul.addr %s316, 18
      %s318 = smul.addr %s317, 8
      %s319 = scalar_lea.vmem %s0, %s318
      %s320 = smul.u32 4, %s19
      %p321 = scmp.lt.s32.totalorder %s19, 1
      %s322 = scalar_select %p321, %s19, 1
      %s323 = smul.addr %s322, 8
      %s324 = smul.addr %s323, 8
      %s325 = scalar_lea.vmem %s1, %s324
      %p326 = scmp.lt.s32.totalorder %s19, 1
      %s327 = scalar_select %p326, %s19, 1
      %s328 = smul.addr %s327, 8
      %s329 = smul.addr %s328, 8
      %s330 = scalar_lea.vmem %s8, %s329
      %v331 = vld [vmem:[%s319] sm:$0xff]
      %v332 = vld [vmem:[%s319 + $0x10] sm:$0xff]
      %v333 = vld [vmem:[%s319 + $0x20] sm:$0xff]
      %v334 = vld [vmem:[%s319 + $0x30] sm:$0xff]
      %v335 = vld [vmem:[%s319 + $0x40] sm:$0xff]
      %v336 = vld [vmem:[%s319 + $0x50] sm:$0xff]
      %v337 = vld [vmem:[%s319 + $0x60] sm:$0xff]
      %v338 = vld [vmem:[%s319 + $0x70] sm:$0xff]
      %v339 = vld [vmem:[%s2] sm:$0xf]
      %s340 = scalar_lea.vmem %s319, 144
      %v341 = vld [vmem:[%s340] sm:$0xff]
      %v342 = vld [vmem:[%s340 + $0x10] sm:$0xff]
      %v343 = vld [vmem:[%s340 + $0x20] sm:$0xff]
      %v344 = vld [vmem:[%s340 + $0x30] sm:$0xff]
      %v345 = vld [vmem:[%s340 + $0x40] sm:$0xff]
      %v346 = vld [vmem:[%s340 + $0x50] sm:$0xff]
      %v347 = vld [vmem:[%s340 + $0x60] sm:$0xff]
      %v348 = vld [vmem:[%s340 + $0x70] sm:$0xff]
      %s349 = scalar_lea.vmem %s2, 4
      %v350 = vld [vmem:[%s349] sm:$0xf]
      %vm351 = vcmask 31744
      %v353 = vsel %vm351, %v341, 0
      %v356 = vsel %vm351, %v342, 0
      %v359 = vsel %vm351, %v343, 0
      %v362 = vsel %vm351, %v344, 0
      %v365 = vsel %vm351, %v345, 0
      %v368 = vsel %vm351, %v346, 0
      %v371 = vsel %vm351, %v347, 0
      %v374 = vsel %vm351, %v348, 0
      %vm376 = vcmask 1043456
      %v378 = vsel %vm376, %v350, 0
      %380 = vmatpush.msra.mxu0 0.0
      %381 = vmatpush.msra.mxu0 0.0
      %382 = vmatpush.msra.mxu0 0.0
      %383 = vmatpush.msra.mxu0 0.0
      %384 = vmatpush.msra.mxu0 0.0
      %385 = vmatpush.msra.mxu0 0.0
      %386 = vmatpush.msra.mxu0 0.0
      %387 = vmatpush.msra.mxu0 0.0
      %388 = vmatpush.msra.mxu0 0.0
      %389 = vmatpush.msra.mxu0 0.0
      %390 = vmatpush.msra.mxu0 0.0
      %391 = vmatpush.msra.mxu0 0.0
      %392 = vmatpush.msra.mxu0 0.0
      %393 = vmatpush.msra.mxu0 0.0
      %394 = vmatpush.msra.mxu0 0.0
      %395 = vmatpush.msra.mxu0 %v378
      %396 = vmatmul.f32.gmra.mxu0 %v353
      %v397 = vpop.f32.mrf.mxu0
      %v398 = vadd.f32 0.0, %v397
      %399 = vmatmul.f32.gmra.mxu0 %v356
      %v400 = vpop.f32.mrf.mxu0
      %v401 = vadd.f32 0.0, %v400
      %402 = vmatmul.f32.gmra.mxu0 %v359
      %v403 = vpop.f32.mrf.mxu0
      %v404 = vadd.f32 0.0, %v403
      %405 = vmatmul.f32.gmra.mxu0 %v362
      %v406 = vpop.f32.mrf.mxu0
      %v407 = vadd.f32 0.0, %v406
      %408 = vmatmul.f32.gmra.mxu0 %v365
      %v409 = vpop.f32.mrf.mxu0
      %v410 = vadd.f32 0.0, %v409
      %411 = vmatmul.f32.gmra.mxu0 %v368
      %v412 = vpop.f32.mrf.mxu0
      %v413 = vadd.f32 0.0, %v412
      %414 = vmatmul.f32.gmra.mxu0 %v371
      %v415 = vpop.f32.mrf.mxu0
      %v416 = vadd.f32 0.0, %v415
      %417 = vmatmul.f32.gmra.mxu0 %v374
      %v418 = vpop.f32.mrf.mxu0
      %v419 = vadd.f32 0.0, %v418
      %420 = vdwg.mxu0
      %v422 = vsel %vm351, %v331, 0
      %v425 = vsel %vm351, %v332, 0
      %v428 = vsel %vm351, %v333, 0
      %v431 = vsel %vm351, %v334, 0
      %v434 = vsel %vm351, %v335, 0
      %v437 = vsel %vm351, %v336, 0
      %v440 = vsel %vm351, %v337, 0
      %v443 = vsel %vm351, %v338, 0
      %v446 = vsel %vm376, %v339, 0
      %448 = vmatpush.msra.mxu0 0.0
      %449 = vmatpush.msra.mxu0 0.0
      %450 = vmatpush.msra.mxu0 0.0
      %451 = vmatpush.msra.mxu0 0.0
      %452 = vmatpush.msra.mxu0 0.0
      %453 = vmatpush.msra.mxu0 0.0
      %454 = vmatpush.msra.mxu0 0.0
      %455 = vmatpush.msra.mxu0 0.0
      %456 = vmatpush.msra.mxu0 0.0
      %457 = vmatpush.msra.mxu0 0.0
      %458 = vmatpush.msra.mxu0 0.0
      %459 = vmatpush.msra.mxu0 0.0
      %460 = vmatpush.msra.mxu0 0.0
      %461 = vmatpush.msra.mxu0 0.0
      %462 = vmatpush.msra.mxu0 0.0
      %463 = vmatpush.msra.mxu0 %v446
      %464 = vmatmul.f32.gmra.mxu0 %v422
      %v465 = vpop.f32.mrf.mxu0
      %v466 = vadd.f32 %v398, %v465
      %467 = vmatmul.f32.gmra.mxu0 %v425
      %v468 = vpop.f32.mrf.mxu0
      %v469 = vadd.f32 %v401, %v468
      %470 = vmatmul.f32.gmra.mxu0 %v428
      %v471 = vpop.f32.mrf.mxu0
      %v472 = vadd.f32 %v404, %v471
      %473 = vmatmul.f32.gmra.mxu0 %v431
      %v474 = vpop.f32.mrf.mxu0
      %v475 = vadd.f32 %v407, %v474
      %476 = vmatmul.f32.gmra.mxu0 %v434
      %v477 = vpop.f32.mrf.mxu0
      %v478 = vadd.f32 %v410, %v477
      %479 = vmatmul.f32.gmra.mxu0 %v437
      %v480 = vpop.f32.mrf.mxu0
      %v481 = vadd.f32 %v413, %v480
      %482 = vmatmul.f32.gmra.mxu0 %v440
      %v483 = vpop.f32.mrf.mxu0
      %v484 = vadd.f32 %v416, %v483
      %485 = vmatmul.f32.gmra.mxu0 %v443
      %v486 = vpop.f32.mrf.mxu0
      %v487 = vadd.f32 %v419, %v486
      %488 = vdwg.mxu0
      %v489 = vld [vmem:[%s319 + $0x1] sm:$0xff]
      %v490 = vld [vmem:[%s319 + $0x11] sm:$0xff]
      %v491 = vld [vmem:[%s319 + $0x21] sm:$0xff]
      %v492 = vld [vmem:[%s319 + $0x31] sm:$0xff]
      %v493 = vld [vmem:[%s319 + $0x41] sm:$0xff]
      %v494 = vld [vmem:[%s319 + $0x51] sm:$0xff]
      %v495 = vld [vmem:[%s319 + $0x61] sm:$0xff]
      %v496 = vld [vmem:[%s319 + $0x71] sm:$0xff]
      %s497 = scalar_lea.vmem %s2, 8
      %v498 = vld [vmem:[%s497] sm:$0xf]
      %v500 = vsel %vm351, %v489, 0
      %v503 = vsel %vm351, %v490, 0
      %v506 = vsel %vm351, %v491, 0
      %v509 = vsel %vm351, %v492, 0
      %v512 = vsel %vm351, %v493, 0
      %v515 = vsel %vm351, %v494, 0
      %v518 = vsel %vm351, %v495, 0
      %v521 = vsel %vm351, %v496, 0
      %v524 = vsel %vm376, %v498, 0
      %526 = vmatpush.msra.mxu0 0.0
      %527 = vmatpush.msra.mxu0 0.0
      %528 = vmatpush.msra.mxu0 0.0
      %529 = vmatpush.msra.mxu0 0.0
      %530 = vmatpush.msra.mxu0 0.0
      %531 = vmatpush.msra.mxu0 0.0
      %532 = vmatpush.msra.mxu0 0.0
      %533 = vmatpush.msra.mxu0 0.0
      %534 = vmatpush.msra.mxu0 0.0
      %535 = vmatpush.msra.mxu0 0.0
      %536 = vmatpush.msra.mxu0 0.0
      %537 = vmatpush.msra.mxu0 0.0
      %538 = vmatpush.msra.mxu0 0.0
      %539 = vmatpush.msra.mxu0 0.0
      %540 = vmatpush.msra.mxu0 0.0
      %541 = vmatpush.msra.mxu0 %v524
      %542 = vmatmul.f32.gmra.mxu0 %v500
      %v543 = vpop.f32.mrf.mxu0
      %v544 = vadd.f32 0.0, %v543
      %545 = vmatmul.f32.gmra.mxu0 %v503
      %v546 = vpop.f32.mrf.mxu0
      %v547 = vadd.f32 0.0, %v546
      %548 = vmatmul.f32.gmra.mxu0 %v506
      %v549 = vpop.f32.mrf.mxu0
      %v550 = vadd.f32 0.0, %v549
      %551 = vmatmul.f32.gmra.mxu0 %v509
      %v552 = vpop.f32.mrf.mxu0
      %v553 = vadd.f32 0.0, %v552
      %554 = vmatmul.f32.gmra.mxu0 %v512
      %v555 = vpop.f32.mrf.mxu0
      %v556 = vadd.f32 0.0, %v555
      %557 = vmatmul.f32.gmra.mxu0 %v515
      %v558 = vpop.f32.mrf.mxu0
      %v559 = vadd.f32 0.0, %v558
      %560 = vmatmul.f32.gmra.mxu0 %v518
      %v561 = vpop.f32.mrf.mxu0
      %v562 = vadd.f32 0.0, %v561
      %563 = vmatmul.f32.gmra.mxu0 %v521
      %v564 = vpop.f32.mrf.mxu0
      %v565 = vadd.f32 0.0, %v564
      %566 = vdwg.mxu0
      %v567 = vadd.f32 %v466, %v544
      %v568 = vadd.f32 %v469, %v547
      %v569 = vadd.f32 %v472, %v550
      %v570 = vadd.f32 %v475, %v553
      %v571 = vadd.f32 %v478, %v556
      %v572 = vadd.f32 %v481, %v559
      %v573 = vadd.f32 %v484, %v562
      %v574 = vadd.f32 %v487, %v565
      %s575 = scalar_lea.vmem %s319, 288
      %v576 = vld [vmem:[%s575] sm:$0xff]
      %v577 = vld [vmem:[%s575 + $0x10] sm:$0xff]
      %v578 = vld [vmem:[%s575 + $0x20] sm:$0xff]
      %v579 = vld [vmem:[%s575 + $0x30] sm:$0xff]
      %v580 = vld [vmem:[%s575 + $0x40] sm:$0xff]
      %v581 = vld [vmem:[%s575 + $0x50] sm:$0xff]
      %v582 = vld [vmem:[%s575 + $0x60] sm:$0xff]
      %v583 = vld [vmem:[%s575 + $0x70] sm:$0xff]
      %s584 = scalar_lea.vmem %s2, 12
      %v585 = vld [vmem:[%s584] sm:$0xf]
      %v587 = vsel %vm351, %v576, 0
      %v590 = vsel %vm351, %v577, 0
      %v593 = vsel %vm351, %v578, 0
      %v596 = vsel %vm351, %v579, 0
      %v599 = vsel %vm351, %v580, 0
      %v602 = vsel %vm351, %v581, 0
      %v605 = vsel %vm351, %v582, 0
      %v608 = vsel %vm351, %v583, 0
      %v611 = vsel %vm376, %v585, 0
      %613 = vmatpush.msra.mxu0 0.0
      %614 = vmatpush.msra.mxu0 0.0
      %615 = vmatpush.msra.mxu0 0.0
      %616 = vmatpush.msra.mxu0 0.0
      %617 = vmatpush.msra.mxu0 0.0
      %618 = vmatpush.msra.mxu0 0.0
      %619 = vmatpush.msra.mxu0 0.0
      %620 = vmatpush.msra.mxu0 0.0
      %621 = vmatpush.msra.mxu0 0.0
      %622 = vmatpush.msra.mxu0 0.0
      %623 = vmatpush.msra.mxu0 0.0
      %624 = vmatpush.msra.mxu0 0.0
      %625 = vmatpush.msra.mxu0 0.0
      %626 = vmatpush.msra.mxu0 0.0
      %627 = vmatpush.msra.mxu0 0.0
      %628 = vmatpush.msra.mxu0 %v611
      %629 = vmatmul.f32.gmra.mxu0 %v587
      %v630 = vpop.f32.mrf.mxu0
      %v631 = vadd.f32 0.0, %v630
      %632 = vmatmul.f32.gmra.mxu0 %v590
      %v633 = vpop.f32.mrf.mxu0
      %v634 = vadd.f32 0.0, %v633
      %635 = vmatmul.f32.gmra.mxu0 %v593
      %v636 = vpop.f32.mrf.mxu0
      %v637 = vadd.f32 0.0, %v636
      %638 = vmatmul.f32.gmra.mxu0 %v596
      %v639 = vpop.f32.mrf.mxu0
      %v640 = vadd.f32 0.0, %v639
      %641 = vmatmul.f32.gmra.mxu0 %v599
      %v642 = vpop.f32.mrf.mxu0
      %v643 = vadd.f32 0.0, %v642
      %644 = vmatmul.f32.gmra.mxu0 %v602
      %v645 = vpop.f32.mrf.mxu0
      %v646 = vadd.f32 0.0, %v645
      %647 = vmatmul.f32.gmra.mxu0 %v605
      %v648 = vpop.f32.mrf.mxu0
      %v649 = vadd.f32 0.0, %v648
      %650 = vmatmul.f32.gmra.mxu0 %v608
      %v651 = vpop.f32.mrf.mxu0
      %v652 = vadd.f32 0.0, %v651
      %653 = vdwg.mxu0
      %v654 = vadd.f32 %v567, %v631
      %v655 = vadd.f32 %v568, %v634
      %v656 = vadd.f32 %v569, %v637
      %v657 = vadd.f32 %v570, %v640
      %v658 = vadd.f32 %v571, %v643
      %v659 = vadd.f32 %v572, %v646
      %v660 = vadd.f32 %v573, %v649
      %v661 = vadd.f32 %v574, %v652
      %s662 = scalar_lea.vmem %s319, 432
      %v663 = vld [vmem:[%s662] sm:$0xff]
      %v664 = vld [vmem:[%s662 + $0x10] sm:$0xff]
      %v665 = vld [vmem:[%s662 + $0x20] sm:$0xff]
      %v666 = vld [vmem:[%s662 + $0x30] sm:$0xff]
      %v667 = vld [vmem:[%s662 + $0x40] sm:$0xff]
      %v668 = vld [vmem:[%s662 + $0x50] sm:$0xff]
      %v669 = vld [vmem:[%s662 + $0x60] sm:$0xff]
      %v670 = vld [vmem:[%s662 + $0x70] sm:$0xff]
      %s671 = scalar_lea.vmem %s2, 16
      %v672 = vld [vmem:[%s671] sm:$0xf]
      %v674 = vsel %vm351, %v663, 0
      %v677 = vsel %vm351, %v664, 0
      %v680 = vsel %vm351, %v665, 0
      %v683 = vsel %vm351, %v666, 0
      %v686 = vsel %vm351, %v667, 0
      %v689 = vsel %vm351, %v668, 0
      %v692 = vsel %vm351, %v669, 0
      %v695 = vsel %vm351, %v670, 0
      %v698 = vsel %vm376, %v672, 0
      %700 = vmatpush.msra.mxu0 0.0
      %701 = vmatpush.msra.mxu0 0.0
      %702 = vmatpush.msra.mxu0 0.0
      %703 = vmatpush.msra.mxu0 0.0
      %704 = vmatpush.msra.mxu0 0.0
      %705 = vmatpush.msra.mxu0 0.0
      %706 = vmatpush.msra.mxu0 0.0
      %707 = vmatpush.msra.mxu0 0.0
      %708 = vmatpush.msra.mxu0 0.0
      %709 = vmatpush.msra.mxu0 0.0
      %710 = vmatpush.msra.mxu0 0.0
      %711 = vmatpush.msra.mxu0 0.0
      %712 = vmatpush.msra.mxu0 0.0
      %713 = vmatpush.msra.mxu0 0.0
      %714 = vmatpush.msra.mxu0 0.0
      %715 = vmatpush.msra.mxu0 %v698
      %716 = vmatmul.f32.gmra.mxu0 %v674
      %v717 = vpop.f32.mrf.mxu0
      %v718 = vadd.f32 0.0, %v717
      %719 = vmatmul.f32.gmra.mxu0 %v677
      %v720 = vpop.f32.mrf.mxu0
      %v721 = vadd.f32 0.0, %v720
      %722 = vmatmul.f32.gmra.mxu0 %v680
      %v723 = vpop.f32.mrf.mxu0
      %v724 = vadd.f32 0.0, %v723
      %725 = vmatmul.f32.gmra.mxu0 %v683
      %v726 = vpop.f32.mrf.mxu0
      %v727 = vadd.f32 0.0, %v726
      %728 = vmatmul.f32.gmra.mxu0 %v686
      %v729 = vpop.f32.mrf.mxu0
      %v730 = vadd.f32 0.0, %v729
      %731 = vmatmul.f32.gmra.mxu0 %v689
      %v732 = vpop.f32.mrf.mxu0
      %v733 = vadd.f32 0.0, %v732
      %734 = vmatmul.f32.gmra.mxu0 %v692
      %v735 = vpop.f32.mrf.mxu0
      %v736 = vadd.f32 0.0, %v735
      %737 = vmatmul.f32.gmra.mxu0 %v695
      %v738 = vpop.f32.mrf.mxu0
      %v739 = vadd.f32 0.0, %v738
      %740 = vdwg.mxu0
      %v741 = vadd.f32 %v654, %v718
      %v742 = vadd.f32 %v655, %v721
      %v743 = vadd.f32 %v656, %v724
      %v744 = vadd.f32 %v657, %v727
      %v745 = vadd.f32 %v658, %v730
      %v746 = vadd.f32 %v659, %v733
      %v747 = vadd.f32 %v660, %v736
      %v748 = vadd.f32 %v661, %v739
      %v749 = vld [vmem:[%s575 + $0x1] sm:$0xff]
      %v750 = vld [vmem:[%s575 + $0x11] sm:$0xff]
      %v751 = vld [vmem:[%s575 + $0x21] sm:$0xff]
      %v752 = vld [vmem:[%s575 + $0x31] sm:$0xff]
      %v753 = vld [vmem:[%s575 + $0x41] sm:$0xff]
      %v754 = vld [vmem:[%s575 + $0x51] sm:$0xff]
      %v755 = vld [vmem:[%s575 + $0x61] sm:$0xff]
      %v756 = vld [vmem:[%s575 + $0x71] sm:$0xff]
      %s757 = scalar_lea.vmem %s2, 20
      %v758 = vld [vmem:[%s757] sm:$0xf]
      %v760 = vsel %vm351, %v749, 0
      %v763 = vsel %vm351, %v750, 0
      %v766 = vsel %vm351, %v751, 0
      %v769 = vsel %vm351, %v752, 0
      %v772 = vsel %vm351, %v753, 0
      %v775 = vsel %vm351, %v754, 0
      %v778 = vsel %vm351, %v755, 0
      %v781 = vsel %vm351, %v756, 0
      %v784 = vsel %vm376, %v758, 0
      %786 = vmatpush.msra.mxu0 0.0
      %787 = vmatpush.msra.mxu0 0.0
      %788 = vmatpush.msra.mxu0 0.0
      %789 = vmatpush.msra.mxu0 0.0
      %790 = vmatpush.msra.mxu0 0.0
      %791 = vmatpush.msra.mxu0 0.0
      %792 = vmatpush.msra.mxu0 0.0
      %793 = vmatpush.msra.mxu0 0.0
      %794 = vmatpush.msra.mxu0 0.0
      %795 = vmatpush.msra.mxu0 0.0
      %796 = vmatpush.msra.mxu0 0.0
      %797 = vmatpush.msra.mxu0 0.0
      %798 = vmatpush.msra.mxu0 0.0
      %799 = vmatpush.msra.mxu0 0.0
      %800 = vmatpush.msra.mxu0 0.0
      %801 = vmatpush.msra.mxu0 %v784
      %802 = vmatmul.f32.gmra.mxu0 %v760
      %v803 = vpop.f32.mrf.mxu0
      %v804 = vadd.f32 0.0, %v803
      %805 = vmatmul.f32.gmra.mxu0 %v763
      %v806 = vpop.f32.mrf.mxu0
      %v807 = vadd.f32 0.0, %v806
      %808 = vmatmul.f32.gmra.mxu0 %v766
      %v809 = vpop.f32.mrf.mxu0
      %v810 = vadd.f32 0.0, %v809
      %811 = vmatmul.f32.gmra.mxu0 %v769
      %v812 = vpop.f32.mrf.mxu0
      %v813 = vadd.f32 0.0, %v812
      %814 = vmatmul.f32.gmra.mxu0 %v772
      %v815 = vpop.f32.mrf.mxu0
      %v816 = vadd.f32 0.0, %v815
      %817 = vmatmul.f32.gmra.mxu0 %v775
      %v818 = vpop.f32.mrf.mxu0
      %v819 = vadd.f32 0.0, %v818
      %820 = vmatmul.f32.gmra.mxu0 %v778
      %v821 = vpop.f32.mrf.mxu0
      %v822 = vadd.f32 0.0, %v821
      %823 = vmatmul.f32.gmra.mxu0 %v781
      %v824 = vpop.f32.mrf.mxu0
      %v825 = vadd.f32 0.0, %v824
      %826 = vdwg.mxu0
      %v827 = vadd.f32 %v741, %v804
      %v828 = vadd.f32 %v742, %v807
      %v829 = vadd.f32 %v743, %v810
      %v830 = vadd.f32 %v744, %v813
      %v831 = vadd.f32 %v745, %v816
      %v832 = vadd.f32 %v746, %v819
      %v833 = vadd.f32 %v747, %v822
      %v834 = vadd.f32 %v748, %v825
      %s835 = scalar_lea.vmem %s319, 16
      %v836 = vld [vmem:[%s835] sm:$0xff]
      %v837 = vld [vmem:[%s835 + $0x10] sm:$0xff]
      %v838 = vld [vmem:[%s835 + $0x20] sm:$0xff]
      %v839 = vld [vmem:[%s835 + $0x30] sm:$0xff]
      %v840 = vld [vmem:[%s835 + $0x40] sm:$0xff]
      %v841 = vld [vmem:[%s835 + $0x50] sm:$0xff]
      %v842 = vld [vmem:[%s835 + $0x60] sm:$0xff]
      %v843 = vld [vmem:[%s835 + $0x70] sm:$0xff]
      %s844 = scalar_lea.vmem %s2, 24
      %v845 = vld [vmem:[%s844] sm:$0xf]
      %v847 = vsel %vm351, %v836, 0
      %v850 = vsel %vm351, %v837, 0
      %v853 = vsel %vm351, %v838, 0
      %v856 = vsel %vm351, %v839, 0
      %v859 = vsel %vm351, %v840, 0
      %v862 = vsel %vm351, %v841, 0
      %v865 = vsel %vm351, %v842, 0
      %v868 = vsel %vm351, %v843, 0
      %v871 = vsel %vm376, %v845, 0
      %873 = vmatpush.msra.mxu0 0.0
      %874 = vmatpush.msra.mxu0 0.0
      %875 = vmatpush.msra.mxu0 0.0
      %876 = vmatpush.msra.mxu0 0.0
      %877 = vmatpush.msra.mxu0 0.0
      %878 = vmatpush.msra.mxu0 0.0
      %879 = vmatpush.msra.mxu0 0.0
      %880 = vmatpush.msra.mxu0 0.0
      %881 = vmatpush.msra.mxu0 0.0
      %882 = vmatpush.msra.mxu0 0.0
      %883 = vmatpush.msra.mxu0 0.0
      %884 = vmatpush.msra.mxu0 0.0
      %885 = vmatpush.msra.mxu0 0.0
      %886 = vmatpush.msra.mxu0 0.0
      %887 = vmatpush.msra.mxu0 0.0
      %888 = vmatpush.msra.mxu0 %v871
      %889 = vmatmul.f32.gmra.mxu0 %v847
      %v890 = vpop.f32.mrf.mxu0
      %v891 = vadd.f32 0.0, %v890
      %892 = vmatmul.f32.gmra.mxu0 %v850
      %v893 = vpop.f32.mrf.mxu0
      %v894 = vadd.f32 0.0, %v893
      %895 = vmatmul.f32.gmra.mxu0 %v853
      %v896 = vpop.f32.mrf.mxu0
      %v897 = vadd.f32 0.0, %v896
      %898 = vmatmul.f32.gmra.mxu0 %v856
      %v899 = vpop.f32.mrf.mxu0
      %v900 = vadd.f32 0.0, %v899
      %901 = vmatmul.f32.gmra.mxu0 %v859
      %v902 = vpop.f32.mrf.mxu0
      %v903 = vadd.f32 0.0, %v902
      %904 = vmatmul.f32.gmra.mxu0 %v862
      %v905 = vpop.f32.mrf.mxu0
      %v906 = vadd.f32 0.0, %v905
      %907 = vmatmul.f32.gmra.mxu0 %v865
      %v908 = vpop.f32.mrf.mxu0
      %v909 = vadd.f32 0.0, %v908
      %910 = vmatmul.f32.gmra.mxu0 %v868
      %v911 = vpop.f32.mrf.mxu0
      %v912 = vadd.f32 0.0, %v911
      %913 = vdwg.mxu0
      %v914 = vadd.f32 %v827, %v891
      %v915 = vadd.f32 %v828, %v894
      %v916 = vadd.f32 %v829, %v897
      %v917 = vadd.f32 %v830, %v900
      %v918 = vadd.f32 %v831, %v903
      %v919 = vadd.f32 %v832, %v906
      %v920 = vadd.f32 %v833, %v909
      %v921 = vadd.f32 %v834, %v912
      %s922 = scalar_lea.vmem %s319, 160
      %v923 = vld [vmem:[%s922] sm:$0xff]
      %v924 = vld [vmem:[%s922 + $0x10] sm:$0xff]
      %v925 = vld [vmem:[%s922 + $0x20] sm:$0xff]
      %v926 = vld [vmem:[%s922 + $0x30] sm:$0xff]
      %v927 = vld [vmem:[%s922 + $0x40] sm:$0xff]
      %v928 = vld [vmem:[%s922 + $0x50] sm:$0xff]
      %v929 = vld [vmem:[%s922 + $0x60] sm:$0xff]
      %v930 = vld [vmem:[%s922 + $0x70] sm:$0xff]
      %s931 = scalar_lea.vmem %s2, 28
      %v932 = vld [vmem:[%s931] sm:$0xf]
      %v934 = vsel %vm351, %v923, 0
      %v937 = vsel %vm351, %v924, 0
      %v940 = vsel %vm351, %v925, 0
      %v943 = vsel %vm351, %v926, 0
      %v946 = vsel %vm351, %v927, 0
      %v949 = vsel %vm351, %v928, 0
      %v952 = vsel %vm351, %v929, 0
      %v955 = vsel %vm351, %v930, 0
      %v958 = vsel %vm376, %v932, 0
      %960 = vmatpush.msra.mxu0 0.0
      %961 = vmatpush.msra.mxu0 0.0
      %962 = vmatpush.msra.mxu0 0.0
      %963 = vmatpush.msra.mxu0 0.0
      %964 = vmatpush.msra.mxu0 0.0
      %965 = vmatpush.msra.mxu0 0.0
      %966 = vmatpush.msra.mxu0 0.0
      %967 = vmatpush.msra.mxu0 0.0
      %968 = vmatpush.msra.mxu0 0.0
      %969 = vmatpush.msra.mxu0 0.0
      %970 = vmatpush.msra.mxu0 0.0
      %971 = vmatpush.msra.mxu0 0.0
      %972 = vmatpush.msra.mxu0 0.0
      %973 = vmatpush.msra.mxu0 0.0
      %974 = vmatpush.msra.mxu0 0.0
      %975 = vmatpush.msra.mxu0 %v958
      %976 = vmatmul.f32.gmra.mxu0 %v934
      %v977 = vpop.f32.mrf.mxu0
      %v978 = vadd.f32 0.0, %v977
      %979 = vmatmul.f32.gmra.mxu0 %v937
      %v980 = vpop.f32.mrf.mxu0
      %v981 = vadd.f32 0.0, %v980
      %982 = vmatmul.f32.gmra.mxu0 %v940
      %v983 = vpop.f32.mrf.mxu0
      %v984 = vadd.f32 0.0, %v983
      %985 = vmatmul.f32.gmra.mxu0 %v943
      %v986 = vpop.f32.mrf.mxu0
      %v987 = vadd.f32 0.0, %v986
      %988 = vmatmul.f32.gmra.mxu0 %v946
      %v989 = vpop.f32.mrf.mxu0
      %v990 = vadd.f32 0.0, %v989
      %991 = vmatmul.f32.gmra.mxu0 %v949
      %v992 = vpop.f32.mrf.mxu0
      %v993 = vadd.f32 0.0, %v992
      %994 = vmatmul.f32.gmra.mxu0 %v952
      %v995 = vpop.f32.mrf.mxu0
      %v996 = vadd.f32 0.0, %v995
      %997 = vmatmul.f32.gmra.mxu0 %v955
      %v998 = vpop.f32.mrf.mxu0
      %v999 = vadd.f32 0.0, %v998
      %1000 = vdwg.mxu0
      %v1001 = vadd.f32 %v914, %v978
      %v1002 = vadd.f32 %v915, %v981
      %v1003 = vadd.f32 %v916, %v984
      %v1004 = vadd.f32 %v917, %v987
      %v1005 = vadd.f32 %v918, %v990
      %v1006 = vadd.f32 %v919, %v993
      %v1007 = vadd.f32 %v920, %v996
      %v1008 = vadd.f32 %v921, %v999
      %v1009 = vld [vmem:[%s835 + $0x1] sm:$0xff]
      %v1010 = vld [vmem:[%s835 + $0x11] sm:$0xff]
      %v1011 = vld [vmem:[%s835 + $0x21] sm:$0xff]
      %v1012 = vld [vmem:[%s835 + $0x31] sm:$0xff]
      %v1013 = vld [vmem:[%s835 + $0x41] sm:$0xff]
      %v1014 = vld [vmem:[%s835 + $0x51] sm:$0xff]
      %v1015 = vld [vmem:[%s835 + $0x61] sm:$0xff]
      %v1016 = vld [vmem:[%s835 + $0x71] sm:$0xff]
      %s1017 = scalar_lea.vmem %s2, 32
      %v1018 = vld [vmem:[%s1017] sm:$0xf]
      %v1020 = vsel %vm351, %v1009, 0
      %v1023 = vsel %vm351, %v1010, 0
      %v1026 = vsel %vm351, %v1011, 0
      %v1029 = vsel %vm351, %v1012, 0
      %v1032 = vsel %vm351, %v1013, 0
      %v1035 = vsel %vm351, %v1014, 0
      %v1038 = vsel %vm351, %v1015, 0
      %v1041 = vsel %vm351, %v1016, 0
      %v1044 = vsel %vm376, %v1018, 0
      %1046 = vmatpush.msra.mxu0 0.0
      %1047 = vmatpush.msra.mxu0 0.0
      %1048 = vmatpush.msra.mxu0 0.0
      %1049 = vmatpush.msra.mxu0 0.0
      %1050 = vmatpush.msra.mxu0 0.0
      %1051 = vmatpush.msra.mxu0 0.0
      %1052 = vmatpush.msra.mxu0 0.0
      %1053 = vmatpush.msra.mxu0 0.0
      %1054 = vmatpush.msra.mxu0 0.0
      %1055 = vmatpush.msra.mxu0 0.0
      %1056 = vmatpush.msra.mxu0 0.0
      %1057 = vmatpush.msra.mxu0 0.0
      %1058 = vmatpush.msra.mxu0 0.0
      %1059 = vmatpush.msra.mxu0 0.0
      %1060 = vmatpush.msra.mxu0 0.0
      %1061 = vmatpush.msra.mxu0 %v1044
      %1062 = vmatmul.f32.gmra.mxu0 %v1020
      %v1063 = vpop.f32.mrf.mxu0
      %v1064 = vadd.f32 0.0, %v1063
      %1065 = vmatmul.f32.gmra.mxu0 %v1023
      %v1066 = vpop.f32.mrf.mxu0
      %v1067 = vadd.f32 0.0, %v1066
      %1068 = vmatmul.f32.gmra.mxu0 %v1026
      %v1069 = vpop.f32.mrf.mxu0
      %v1070 = vadd.f32 0.0, %v1069
      %1071 = vmatmul.f32.gmra.mxu0 %v1029
      %v1072 = vpop.f32.mrf.mxu0
      %v1073 = vadd.f32 0.0, %v1072
      %1074 = vmatmul.f32.gmra.mxu0 %v1032
      %v1075 = vpop.f32.mrf.mxu0
      %v1076 = vadd.f32 0.0, %v1075
      %1077 = vmatmul.f32.gmra.mxu0 %v1035
      %v1078 = vpop.f32.mrf.mxu0
      %v1079 = vadd.f32 0.0, %v1078
      %1080 = vmatmul.f32.gmra.mxu0 %v1038
      %v1081 = vpop.f32.mrf.mxu0
      %v1082 = vadd.f32 0.0, %v1081
      %1083 = vmatmul.f32.gmra.mxu0 %v1041
      %v1084 = vpop.f32.mrf.mxu0
      %v1085 = vadd.f32 0.0, %v1084
      %1086 = vdwg.mxu0
      %v1087 = vadd.f32 %v1001, %v1064
      %v1088 = vadd.f32 %v1002, %v1067
      %v1089 = vadd.f32 %v1003, %v1070
      %v1090 = vadd.f32 %v1004, %v1073
      %v1091 = vadd.f32 %v1005, %v1076
      %v1092 = vadd.f32 %v1006, %v1079
      %v1093 = vadd.f32 %v1007, %v1082
      %v1094 = vadd.f32 %v1008, %v1085
      %v1095 = vld [vmem:[%s3] sm:$0x1]
      %v1097 = vperm.slane %v1095, 0
      %v1099 = vadd.f32 %v1087, %v1097
      %v1100 = vadd.f32 %v1088, %v1097
      %v1101 = vadd.f32 %v1089, %v1097
      %v1102 = vadd.f32 %v1090, %v1097
      %v1103 = vadd.f32 %v1091, %v1097
      %v1104 = vadd.f32 %v1092, %v1097
      %v1105 = vadd.f32 %v1093, %v1097
      %v1106 = vadd.f32 %v1094, %v1097
      %v1107 = vmax.f32 %v1099, 0.0
      %v1108 = vmax.f32 %v1100, 0.0
      %v1109 = vmax.f32 %v1101, 0.0
      %v1110 = vmax.f32 %v1102, 0.0
      %v1111 = vmax.f32 %v1103, 0.0
      %v1112 = vmax.f32 %v1104, 0.0
      %v1113 = vmax.f32 %v1105, 0.0
      %v1114 = vmax.f32 %v1106, 0.0
      %1115 = vst [vmem:[#allocation2] sm:$0xff] 0.0
      %1116 = vst [vmem:[#allocation2 + $0x8] sm:$0x3] 0.0
      %1117 = vst [vmem:[#allocation2 + $0x10] sm:$0xff] 0.0
      %1118 = vst [vmem:[#allocation2 + $0x18] sm:$0x3] 0.0
      %1119 = vst [vmem:[#allocation2 + $0x20] sm:$0xff] 0.0
      %1120 = vst [vmem:[#allocation2 + $0x28] sm:$0x3] 0.0
      %1121 = vst [vmem:[#allocation2 + $0x30] sm:$0xff] 0.0
      %1122 = vst [vmem:[#allocation2 + $0x38] sm:$0x3] 0.0
      %1123 = vst [vmem:[#allocation2 + $0x40] sm:$0xff] 0.0
      %1124 = vst [vmem:[#allocation2 + $0x48] sm:$0x3] 0.0
      %1125 = vst [vmem:[#allocation2 + $0x50] sm:$0xff] 0.0
      %1126 = vst [vmem:[#allocation2 + $0x58] sm:$0x3] 0.0
      %1127 = vst [vmem:[#allocation2 + $0x60] sm:$0xff] 0.0
      %1128 = vst [vmem:[#allocation2 + $0x68] sm:$0x3] 0.0
      %1129 = vst [vmem:[#allocation2 + $0x70] sm:$0xff] 0.0
      %1130 = vst [vmem:[#allocation2 + $0x78] sm:$0x3] 0.0
      %1131 = vst [vmem:[#allocation2 + $0x80] sm:$0xff] 0.0
      %1132 = vst [vmem:[#allocation2 + $0x88] sm:$0x3] 0.0
      %1133 = vst [vmem:[#allocation2 + $0x90] sm:$0xff] 0.0
      %1134 = vst [vmem:[#allocation2 + $0x98] sm:$0x3] 0.0
      %s1135 = scalar_lea.vmem [#allocation2], 16
      %1136 = vst [vmem:[%s1135 + $0x1] sm:$0xff] %v1107
      %1137 = vst [vmem:[%s1135 + $0x11] sm:$0xff] %v1108
      %1138 = vst [vmem:[%s1135 + $0x21] sm:$0xff] %v1109
      %1139 = vst [vmem:[%s1135 + $0x31] sm:$0xff] %v1110
      %1140 = vst [vmem:[%s1135 + $0x41] sm:$0xff] %v1111
      %1141 = vst [vmem:[%s1135 + $0x51] sm:$0xff] %v1112
      %1142 = vst [vmem:[%s1135 + $0x61] sm:$0xff] %v1113
      %1143 = vst [vmem:[%s1135 + $0x71] sm:$0xff] %v1114
      %v1144 = vld [vmem:[#allocation2] sm:$0xff]
      %v1145 = vld [vmem:[#allocation2 + $0x10] sm:$0xff]
      %v1146 = vld [vmem:[#allocation2 + $0x20] sm:$0xff]
      %v1147 = vld [vmem:[#allocation2 + $0x30] sm:$0xff]
      %v1148 = vld [vmem:[#allocation2 + $0x40] sm:$0xff]
      %v1149 = vld [vmem:[#allocation2 + $0x50] sm:$0xff]
      %v1150 = vld [vmem:[#allocation2 + $0x60] sm:$0xff]
      %v1151 = vld [vmem:[#allocation2 + $0x70] sm:$0xff]
      %v1152 = vld [vmem:[%s4] sm:$0xff]
      %v1153 = vld [vmem:[%s4 + $0x8] sm:$0xff]
      %v1154 = vld [vmem:[%s4 + $0x10] sm:$0xff]
      %v1155 = vld [vmem:[%s4 + $0x18] sm:$0xff]
      %v1156 = vld [vmem:[%s4 + $0x20] sm:$0xff]
      %v1157 = vld [vmem:[%s4 + $0x28] sm:$0xff]
      %v1158 = vld [vmem:[%s4 + $0x30] sm:$0xff]
      %v1159 = vld [vmem:[%s4 + $0x38] sm:$0xff]
      %v1160 = vld [vmem:[%s4 + $0x40] sm:$0xff]
      %v1161 = vld [vmem:[%s4 + $0x48] sm:$0xff]
      %v1162 = vld [vmem:[%s4 + $0x50] sm:$0xff]
      %v1163 = vld [vmem:[%s4 + $0x58] sm:$0xff]
      %v1164 = vld [vmem:[%s4 + $0x60] sm:$0xff]
      %v1165 = vld [vmem:[%s4 + $0x68] sm:$0xff]
      %v1166 = vld [vmem:[%s4 + $0x70] sm:$0xff]
      %v1167 = vld [vmem:[%s4 + $0x78] sm:$0xff]
      %v1168 = vld [vmem:[#allocation2 + $0x1] sm:$0xff]
      %v1169 = vld [vmem:[#allocation2 + $0x11] sm:$0xff]
      %v1170 = vld [vmem:[#allocation2 + $0x21] sm:$0xff]
      %v1171 = vld [vmem:[#allocation2 + $0x31] sm:$0xff]
      %v1172 = vld [vmem:[#allocation2 + $0x41] sm:$0xff]
      %v1173 = vld [vmem:[#allocation2 + $0x51] sm:$0xff]
      %v1174 = vld [vmem:[#allocation2 + $0x61] sm:$0xff]
      %v1175 = vld [vmem:[#allocation2 + $0x71] sm:$0xff]
      %s1176 = scalar_lea.vmem %s4, 128
      %v1177 = vld [vmem:[%s1176] sm:$0xff]
      %v1178 = vld [vmem:[%s1176 + $0x8] sm:$0xff]
      %v1179 = vld [vmem:[%s1176 + $0x10] sm:$0xff]
      %v1180 = vld [vmem:[%s1176 + $0x18] sm:$0xff]
      %v1181 = vld [vmem:[%s1176 + $0x20] sm:$0xff]
      %v1182 = vld [vmem:[%s1176 + $0x28] sm:$0xff]
      %v1183 = vld [vmem:[%s1176 + $0x30] sm:$0xff]
      %v1184 = vld [vmem:[%s1176 + $0x38] sm:$0xff]
      %v1185 = vld [vmem:[%s1176 + $0x40] sm:$0xff]
      %v1186 = vld [vmem:[%s1176 + $0x48] sm:$0xff]
      %v1187 = vld [vmem:[%s1176 + $0x50] sm:$0xff]
      %v1188 = vld [vmem:[%s1176 + $0x58] sm:$0xff]
      %v1189 = vld [vmem:[%s1176 + $0x60] sm:$0xff]
      %v1190 = vld [vmem:[%s1176 + $0x68] sm:$0xff]
      %v1191 = vld [vmem:[%s1176 + $0x70] sm:$0xff]
      %v1192 = vld [vmem:[%s1176 + $0x78] sm:$0xff]
      %1193 = vmatpush.msra.mxu0 %v1192
      %1194 = vmatpush.msra.mxu0 %v1191
      %1195 = vmatpush.msra.mxu0 %v1190
      %1196 = vmatpush.msra.mxu0 %v1189
      %1197 = vmatpush.msra.mxu0 %v1188
      %1198 = vmatpush.msra.mxu0 %v1187
      %1199 = vmatpush.msra.mxu0 %v1186
      %1200 = vmatpush.msra.mxu0 %v1185
      %1201 = vmatpush.msra.mxu0 %v1184
      %1202 = vmatpush.msra.mxu0 %v1183
      %1203 = vmatpush.msra.mxu0 %v1182
      %1204 = vmatpush.msra.mxu0 %v1181
      %1205 = vmatpush.msra.mxu0 %v1180
      %1206 = vmatpush.msra.mxu0 %v1179
      %1207 = vmatpush.msra.mxu0 %v1178
      %1208 = vmatpush.msra.mxu0 %v1177
      %1209 = vmatmul.f32.gmra.mxu0 %v1168
      %v1210 = vpop.f32.mrf.mxu0
      %v1211 = vadd.f32 0.0, %v1210
      %1212 = vmatmul.f32.gmra.mxu0 %v1169
      %v1213 = vpop.f32.mrf.mxu0
      %v1214 = vadd.f32 0.0, %v1213
      %1215 = vmatmul.f32.gmra.mxu0 %v1170
      %v1216 = vpop.f32.mrf.mxu0
      %v1217 = vadd.f32 0.0, %v1216
      %1218 = vmatmul.f32.gmra.mxu0 %v1171
      %v1219 = vpop.f32.mrf.mxu0
      %v1220 = vadd.f32 0.0, %v1219
      %1221 = vmatmul.f32.gmra.mxu0 %v1172
      %v1222 = vpop.f32.mrf.mxu0
      %v1223 = vadd.f32 0.0, %v1222
      %1224 = vmatmul.f32.gmra.mxu0 %v1173
      %v1225 = vpop.f32.mrf.mxu0
      %v1226 = vadd.f32 0.0, %v1225
      %1227 = vmatmul.f32.gmra.mxu0 %v1174
      %v1228 = vpop.f32.mrf.mxu0
      %v1229 = vadd.f32 0.0, %v1228
      %1230 = vmatmul.f32.gmra.mxu0 %v1175
      %v1231 = vpop.f32.mrf.mxu0
      %v1232 = vadd.f32 0.0, %v1231
      %1233 = vdwg.mxu0
      %1234 = vmatpush.msra.mxu0 %v1167
      %1235 = vmatpush.msra.mxu0 %v1166
      %1236 = vmatpush.msra.mxu0 %v1165
      %1237 = vmatpush.msra.mxu0 %v1164
      %1238 = vmatpush.msra.mxu0 %v1163
      %1239 = vmatpush.msra.mxu0 %v1162
      %1240 = vmatpush.msra.mxu0 %v1161
      %1241 = vmatpush.msra.mxu0 %v1160
      %1242 = vmatpush.msra.mxu0 %v1159
      %1243 = vmatpush.msra.mxu0 %v1158
      %1244 = vmatpush.msra.mxu0 %v1157
      %1245 = vmatpush.msra.mxu0 %v1156
      %1246 = vmatpush.msra.mxu0 %v1155
      %1247 = vmatpush.msra.mxu0 %v1154
      %1248 = vmatpush.msra.mxu0 %v1153
      %1249 = vmatpush.msra.mxu0 %v1152
      %1250 = vmatmul.f32.gmra.mxu0 %v1144
      %v1251 = vpop.f32.mrf.mxu0
      %v1252 = vadd.f32 %v1211, %v1251
      %1253 = vmatmul.f32.gmra.mxu0 %v1145
      %v1254 = vpop.f32.mrf.mxu0
      %v1255 = vadd.f32 %v1214, %v1254
      %1256 = vmatmul.f32.gmra.mxu0 %v1146
      %v1257 = vpop.f32.mrf.mxu0
      %v1258 = vadd.f32 %v1217, %v1257
      %1259 = vmatmul.f32.gmra.mxu0 %v1147
      %v1260 = vpop.f32.mrf.mxu0
      %v1261 = vadd.f32 %v1220, %v1260
      %1262 = vmatmul.f32.gmra.mxu0 %v1148
      %v1263 = vpop.f32.mrf.mxu0
      %v1264 = vadd.f32 %v1223, %v1263
      %1265 = vmatmul.f32.gmra.mxu0 %v1149
      %v1266 = vpop.f32.mrf.mxu0
      %v1267 = vadd.f32 %v1226, %v1266
      %1268 = vmatmul.f32.gmra.mxu0 %v1150
      %v1269 = vpop.f32.mrf.mxu0
      %v1270 = vadd.f32 %v1229, %v1269
      %1271 = vmatmul.f32.gmra.mxu0 %v1151
      %v1272 = vpop.f32.mrf.mxu0
      %v1273 = vadd.f32 %v1232, %v1272
      %1274 = vdwg.mxu0
      %v1275 = vld [vmem:[#allocation2 + $0x2] sm:$0xff]
      %v1276 = vld [vmem:[#allocation2 + $0x12] sm:$0xff]
      %v1277 = vld [vmem:[#allocation2 + $0x22] sm:$0xff]
      %v1278 = vld [vmem:[#allocation2 + $0x32] sm:$0xff]
      %v1279 = vld [vmem:[#allocation2 + $0x42] sm:$0xff]
      %v1280 = vld [vmem:[#allocation2 + $0x52] sm:$0xff]
      %v1281 = vld [vmem:[#allocation2 + $0x62] sm:$0xff]
      %v1282 = vld [vmem:[#allocation2 + $0x72] sm:$0xff]
      %s1283 = scalar_lea.vmem %s4, 256
      %v1284 = vld [vmem:[%s1283] sm:$0xff]
      %v1285 = vld [vmem:[%s1283 + $0x8] sm:$0xff]
      %v1286 = vld [vmem:[%s1283 + $0x10] sm:$0xff]
      %v1287 = vld [vmem:[%s1283 + $0x18] sm:$0xff]
      %v1288 = vld [vmem:[%s1283 + $0x20] sm:$0xff]
      %v1289 = vld [vmem:[%s1283 + $0x28] sm:$0xff]
      %v1290 = vld [vmem:[%s1283 + $0x30] sm:$0xff]
      %v1291 = vld [vmem:[%s1283 + $0x38] sm:$0xff]
      %v1292 = vld [vmem:[%s1283 + $0x40] sm:$0xff]
      %v1293 = vld [vmem:[%s1283 + $0x48] sm:$0xff]
      %v1294 = vld [vmem:[%s1283 + $0x50] sm:$0xff]
      %v1295 = vld [vmem:[%s1283 + $0x58] sm:$0xff]
      %v1296 = vld [vmem:[%s1283 + $0x60] sm:$0xff]
      %v1297 = vld [vmem:[%s1283 + $0x68] sm:$0xff]
      %v1298 = vld [vmem:[%s1283 + $0x70] sm:$0xff]
      %v1299 = vld [vmem:[%s1283 + $0x78] sm:$0xff]
      %1300 = vmatpush.msra.mxu0 %v1299
      %1301 = vmatpush.msra.mxu0 %v1298
      %1302 = vmatpush.msra.mxu0 %v1297
      %1303 = vmatpush.msra.mxu0 %v1296
      %1304 = vmatpush.msra.mxu0 %v1295
      %1305 = vmatpush.msra.mxu0 %v1294
      %1306 = vmatpush.msra.mxu0 %v1293
      %1307 = vmatpush.msra.mxu0 %v1292
      %1308 = vmatpush.msra.mxu0 %v1291
      %1309 = vmatpush.msra.mxu0 %v1290
      %1310 = vmatpush.msra.mxu0 %v1289
      %1311 = vmatpush.msra.mxu0 %v1288
      %1312 = vmatpush.msra.mxu0 %v1287
      %1313 = vmatpush.msra.mxu0 %v1286
      %1314 = vmatpush.msra.mxu0 %v1285
      %1315 = vmatpush.msra.mxu0 %v1284
      %1316 = vmatmul.f32.gmra.mxu0 %v1275
      %v1317 = vpop.f32.mrf.mxu0
      %v1318 = vadd.f32 0.0, %v1317
      %1319 = vmatmul.f32.gmra.mxu0 %v1276
      %v1320 = vpop.f32.mrf.mxu0
      %v1321 = vadd.f32 0.0, %v1320
      %1322 = vmatmul.f32.gmra.mxu0 %v1277
      %v1323 = vpop.f32.mrf.mxu0
      %v1324 = vadd.f32 0.0, %v1323
      %1325 = vmatmul.f32.gmra.mxu0 %v1278
      %v1326 = vpop.f32.mrf.mxu0
      %v1327 = vadd.f32 0.0, %v1326
      %1328 = vmatmul.f32.gmra.mxu0 %v1279
      %v1329 = vpop.f32.mrf.mxu0
      %v1330 = vadd.f32 0.0, %v1329
      %1331 = vmatmul.f32.gmra.mxu0 %v1280
      %v1332 = vpop.f32.mrf.mxu0
      %v1333 = vadd.f32 0.0, %v1332
      %1334 = vmatmul.f32.gmra.mxu0 %v1281
      %v1335 = vpop.f32.mrf.mxu0
      %v1336 = vadd.f32 0.0, %v1335
      %1337 = vmatmul.f32.gmra.mxu0 %v1282
      %v1338 = vpop.f32.mrf.mxu0
      %v1339 = vadd.f32 0.0, %v1338
      %1340 = vdwg.mxu0
      %v1341 = vadd.f32 %v1252, %v1318
      %v1342 = vadd.f32 %v1255, %v1321
      %v1343 = vadd.f32 %v1258, %v1324
      %v1344 = vadd.f32 %v1261, %v1327
      %v1345 = vadd.f32 %v1264, %v1330
      %v1346 = vadd.f32 %v1267, %v1333
      %v1347 = vadd.f32 %v1270, %v1336
      %v1348 = vadd.f32 %v1273, %v1339
      %v1349 = vld [vmem:[%s1135] sm:$0xff]
      %v1350 = vld [vmem:[%s1135 + $0x10] sm:$0xff]
      %v1351 = vld [vmem:[%s1135 + $0x20] sm:$0xff]
      %v1352 = vld [vmem:[%s1135 + $0x30] sm:$0xff]
      %v1353 = vld [vmem:[%s1135 + $0x40] sm:$0xff]
      %v1354 = vld [vmem:[%s1135 + $0x50] sm:$0xff]
      %v1355 = vld [vmem:[%s1135 + $0x60] sm:$0xff]
      %v1356 = vld [vmem:[%s1135 + $0x70] sm:$0xff]
      %s1357 = scalar_lea.vmem %s4, 384
      %v1358 = vld [vmem:[%s1357] sm:$0xff]
      %v1359 = vld [vmem:[%s1357 + $0x8] sm:$0xff]
      %v1360 = vld [vmem:[%s1357 + $0x10] sm:$0xff]
      %v1361 = vld [vmem:[%s1357 + $0x18] sm:$0xff]
      %v1362 = vld [vmem:[%s1357 + $0x20] sm:$0xff]
      %v1363 = vld [vmem:[%s1357 + $0x28] sm:$0xff]
      %v1364 = vld [vmem:[%s1357 + $0x30] sm:$0xff]
      %v1365 = vld [vmem:[%s1357 + $0x38] sm:$0xff]
      %v1366 = vld [vmem:[%s1357 + $0x40] sm:$0xff]
      %v1367 = vld [vmem:[%s1357 + $0x48] sm:$0xff]
      %v1368 = vld [vmem:[%s1357 + $0x50] sm:$0xff]
      %v1369 = vld [vmem:[%s1357 + $0x58] sm:$0xff]
      %v1370 = vld [vmem:[%s1357 + $0x60] sm:$0xff]
      %v1371 = vld [vmem:[%s1357 + $0x68] sm:$0xff]
      %v1372 = vld [vmem:[%s1357 + $0x70] sm:$0xff]
      %v1373 = vld [vmem:[%s1357 + $0x78] sm:$0xff]
      %1374 = vmatpush.msra.mxu0 %v1373
      %1375 = vmatpush.msra.mxu0 %v1372
      %1376 = vmatpush.msra.mxu0 %v1371
      %1377 = vmatpush.msra.mxu0 %v1370
      %1378 = vmatpush.msra.mxu0 %v1369
      %1379 = vmatpush.msra.mxu0 %v1368
      %1380 = vmatpush.msra.mxu0 %v1367
      %1381 = vmatpush.msra.mxu0 %v1366
      %1382 = vmatpush.msra.mxu0 %v1365
      %1383 = vmatpush.msra.mxu0 %v1364
      %1384 = vmatpush.msra.mxu0 %v1363
      %1385 = vmatpush.msra.mxu0 %v1362
      %1386 = vmatpush.msra.mxu0 %v1361
      %1387 = vmatpush.msra.mxu0 %v1360
      %1388 = vmatpush.msra.mxu0 %v1359
      %1389 = vmatpush.msra.mxu0 %v1358
      %1390 = vmatmul.f32.gmra.mxu0 %v1349
      %v1391 = vpop.f32.mrf.mxu0
      %v1392 = vadd.f32 0.0, %v1391
      %1393 = vmatmul.f32.gmra.mxu0 %v1350
      %v1394 = vpop.f32.mrf.mxu0
      %v1395 = vadd.f32 0.0, %v1394
      %1396 = vmatmul.f32.gmra.mxu0 %v1351
      %v1397 = vpop.f32.mrf.mxu0
      %v1398 = vadd.f32 0.0, %v1397
      %1399 = vmatmul.f32.gmra.mxu0 %v1352
      %v1400 = vpop.f32.mrf.mxu0
      %v1401 = vadd.f32 0.0, %v1400
      %1402 = vmatmul.f32.gmra.mxu0 %v1353
      %v1403 = vpop.f32.mrf.mxu0
      %v1404 = vadd.f32 0.0, %v1403
      %1405 = vmatmul.f32.gmra.mxu0 %v1354
      %v1406 = vpop.f32.mrf.mxu0
      %v1407 = vadd.f32 0.0, %v1406
      %1408 = vmatmul.f32.gmra.mxu0 %v1355
      %v1409 = vpop.f32.mrf.mxu0
      %v1410 = vadd.f32 0.0, %v1409
      %1411 = vmatmul.f32.gmra.mxu0 %v1356
      %v1412 = vpop.f32.mrf.mxu0
      %v1413 = vadd.f32 0.0, %v1412
      %1414 = vdwg.mxu0
      %v1415 = vadd.f32 %v1341, %v1392
      %v1416 = vadd.f32 %v1342, %v1395
      %v1417 = vadd.f32 %v1343, %v1398
      %v1418 = vadd.f32 %v1344, %v1401
      %v1419 = vadd.f32 %v1345, %v1404
      %v1420 = vadd.f32 %v1346, %v1407
      %v1421 = vadd.f32 %v1347, %v1410
      %v1422 = vadd.f32 %v1348, %v1413
      %v1423 = vld [vmem:[%s1135 + $0x1] sm:$0xff]
      %v1424 = vld [vmem:[%s1135 + $0x11] sm:$0xff]
      %v1425 = vld [vmem:[%s1135 + $0x21] sm:$0xff]
      %v1426 = vld [vmem:[%s1135 + $0x31] sm:$0xff]
      %v1427 = vld [vmem:[%s1135 + $0x41] sm:$0xff]
      %v1428 = vld [vmem:[%s1135 + $0x51] sm:$0xff]
      %v1429 = vld [vmem:[%s1135 + $0x61] sm:$0xff]
      %v1430 = vld [vmem:[%s1135 + $0x71] sm:$0xff]
      %s1431 = scalar_lea.vmem %s4, 512
      %v1432 = vld [vmem:[%s1431] sm:$0xff]
      %v1433 = vld [vmem:[%s1431 + $0x8] sm:$0xff]
      %v1434 = vld [vmem:[%s1431 + $0x10] sm:$0xff]
      %v1435 = vld [vmem:[%s1431 + $0x18] sm:$0xff]
      %v1436 = vld [vmem:[%s1431 + $0x20] sm:$0xff]
      %v1437 = vld [vmem:[%s1431 + $0x28] sm:$0xff]
      %v1438 = vld [vmem:[%s1431 + $0x30] sm:$0xff]
      %v1439 = vld [vmem:[%s1431 + $0x38] sm:$0xff]
      %v1440 = vld [vmem:[%s1431 + $0x40] sm:$0xff]
      %v1441 = vld [vmem:[%s1431 + $0x48] sm:$0xff]
      %v1442 = vld [vmem:[%s1431 + $0x50] sm:$0xff]
      %v1443 = vld [vmem:[%s1431 + $0x58] sm:$0xff]
      %v1444 = vld [vmem:[%s1431 + $0x60] sm:$0xff]
      %v1445 = vld [vmem:[%s1431 + $0x68] sm:$0xff]
      %v1446 = vld [vmem:[%s1431 + $0x70] sm:$0xff]
      %v1447 = vld [vmem:[%s1431 + $0x78] sm:$0xff]
      %1448 = vmatpush.msra.mxu0 %v1447
      %1449 = vmatpush.msra.mxu0 %v1446
      %1450 = vmatpush.msra.mxu0 %v1445
      %1451 = vmatpush.msra.mxu0 %v1444
      %1452 = vmatpush.msra.mxu0 %v1443
      %1453 = vmatpush.msra.mxu0 %v1442
      %1454 = vmatpush.msra.mxu0 %v1441
      %1455 = vmatpush.msra.mxu0 %v1440
      %1456 = vmatpush.msra.mxu0 %v1439
      %1457 = vmatpush.msra.mxu0 %v1438
      %1458 = vmatpush.msra.mxu0 %v1437
      %1459 = vmatpush.msra.mxu0 %v1436
      %1460 = vmatpush.msra.mxu0 %v1435
      %1461 = vmatpush.msra.mxu0 %v1434
      %1462 = vmatpush.msra.mxu0 %v1433
      %1463 = vmatpush.msra.mxu0 %v1432
      %1464 = vmatmul.f32.gmra.mxu0 %v1423
      %v1465 = vpop.f32.mrf.mxu0
      %v1466 = vadd.f32 0.0, %v1465
      %1467 = vmatmul.f32.gmra.mxu0 %v1424
      %v1468 = vpop.f32.mrf.mxu0
      %v1469 = vadd.f32 0.0, %v1468
      %1470 = vmatmul.f32.gmra.mxu0 %v1425
      %v1471 = vpop.f32.mrf.mxu0
      %v1472 = vadd.f32 0.0, %v1471
      %1473 = vmatmul.f32.gmra.mxu0 %v1426
      %v1474 = vpop.f32.mrf.mxu0
      %v1475 = vadd.f32 0.0, %v1474
      %1476 = vmatmul.f32.gmra.mxu0 %v1427
      %v1477 = vpop.f32.mrf.mxu0
      %v1478 = vadd.f32 0.0, %v1477
      %1479 = vmatmul.f32.gmra.mxu0 %v1428
      %v1480 = vpop.f32.mrf.mxu0
      %v1481 = vadd.f32 0.0, %v1480
      %1482 = vmatmul.f32.gmra.mxu0 %v1429
      %v1483 = vpop.f32.mrf.mxu0
      %v1484 = vadd.f32 0.0, %v1483
      %1485 = vmatmul.f32.gmra.mxu0 %v1430
      %v1486 = vpop.f32.mrf.mxu0
      %v1487 = vadd.f32 0.0, %v1486
      %1488 = vdwg.mxu0
      %v1489 = vadd.f32 %v1415, %v1466
      %v1490 = vadd.f32 %v1416, %v1469
      %v1491 = vadd.f32 %v1417, %v1472
      %v1492 = vadd.f32 %v1418, %v1475
      %v1493 = vadd.f32 %v1419, %v1478
      %v1494 = vadd.f32 %v1420, %v1481
      %v1495 = vadd.f32 %v1421, %v1484
      %v1496 = vadd.f32 %v1422, %v1487
      %v1497 = vld [vmem:[%s1135 + $0x2] sm:$0xff]
      %v1498 = vld [vmem:[%s1135 + $0x12] sm:$0xff]
      %v1499 = vld [vmem:[%s1135 + $0x22] sm:$0xff]
      %v1500 = vld [vmem:[%s1135 + $0x32] sm:$0xff]
      %v1501 = vld [vmem:[%s1135 + $0x42] sm:$0xff]
      %v1502 = vld [vmem:[%s1135 + $0x52] sm:$0xff]
      %v1503 = vld [vmem:[%s1135 + $0x62] sm:$0xff]
      %v1504 = vld [vmem:[%s1135 + $0x72] sm:$0xff]
      %s1505 = scalar_lea.vmem %s4, 640
      %v1506 = vld [vmem:[%s1505] sm:$0xff]
      %v1507 = vld [vmem:[%s1505 + $0x8] sm:$0xff]
      %v1508 = vld [vmem:[%s1505 + $0x10] sm:$0xff]
      %v1509 = vld [vmem:[%s1505 + $0x18] sm:$0xff]
      %v1510 = vld [vmem:[%s1505 + $0x20] sm:$0xff]
      %v1511 = vld [vmem:[%s1505 + $0x28] sm:$0xff]
      %v1512 = vld [vmem:[%s1505 + $0x30] sm:$0xff]
      %v1513 = vld [vmem:[%s1505 + $0x38] sm:$0xff]
      %v1514 = vld [vmem:[%s1505 + $0x40] sm:$0xff]
      %v1515 = vld [vmem:[%s1505 + $0x48] sm:$0xff]
      %v1516 = vld [vmem:[%s1505 + $0x50] sm:$0xff]
      %v1517 = vld [vmem:[%s1505 + $0x58] sm:$0xff]
      %v1518 = vld [vmem:[%s1505 + $0x60] sm:$0xff]
      %v1519 = vld [vmem:[%s1505 + $0x68] sm:$0xff]
      %v1520 = vld [vmem:[%s1505 + $0x70] sm:$0xff]
      %v1521 = vld [vmem:[%s1505 + $0x78] sm:$0xff]
      %1522 = vmatpush.msra.mxu0 %v1521
      %1523 = vmatpush.msra.mxu0 %v1520
      %1524 = vmatpush.msra.mxu0 %v1519
      %1525 = vmatpush.msra.mxu0 %v1518
      %1526 = vmatpush.msra.mxu0 %v1517
      %1527 = vmatpush.msra.mxu0 %v1516
      %1528 = vmatpush.msra.mxu0 %v1515
      %1529 = vmatpush.msra.mxu0 %v1514
      %1530 = vmatpush.msra.mxu0 %v1513
      %1531 = vmatpush.msra.mxu0 %v1512
      %1532 = vmatpush.msra.mxu0 %v1511
      %1533 = vmatpush.msra.mxu0 %v1510
      %1534 = vmatpush.msra.mxu0 %v1509
      %1535 = vmatpush.msra.mxu0 %v1508
      %1536 = vmatpush.msra.mxu0 %v1507
      %1537 = vmatpush.msra.mxu0 %v1506
      %1538 = vmatmul.f32.gmra.mxu0 %v1497
      %v1539 = vpop.f32.mrf.mxu0
      %v1540 = vadd.f32 0.0, %v1539
      %1541 = vmatmul.f32.gmra.mxu0 %v1498
      %v1542 = vpop.f32.mrf.mxu0
      %v1543 = vadd.f32 0.0, %v1542
      %1544 = vmatmul.f32.gmra.mxu0 %v1499
      %v1545 = vpop.f32.mrf.mxu0
      %v1546 = vadd.f32 0.0, %v1545
      %1547 = vmatmul.f32.gmra.mxu0 %v1500
      %v1548 = vpop.f32.mrf.mxu0
      %v1549 = vadd.f32 0.0, %v1548
      %1550 = vmatmul.f32.gmra.mxu0 %v1501
      %v1551 = vpop.f32.mrf.mxu0
      %v1552 = vadd.f32 0.0, %v1551
      %1553 = vmatmul.f32.gmra.mxu0 %v1502
      %v1554 = vpop.f32.mrf.mxu0
      %v1555 = vadd.f32 0.0, %v1554
      %1556 = vmatmul.f32.gmra.mxu0 %v1503
      %v1557 = vpop.f32.mrf.mxu0
      %v1558 = vadd.f32 0.0, %v1557
      %1559 = vmatmul.f32.gmra.mxu0 %v1504
      %v1560 = vpop.f32.mrf.mxu0
      %v1561 = vadd.f32 0.0, %v1560
      %1562 = vdwg.mxu0
      %v1563 = vadd.f32 %v1489, %v1540
      %v1564 = vadd.f32 %v1490, %v1543
      %v1565 = vadd.f32 %v1491, %v1546
      %v1566 = vadd.f32 %v1492, %v1549
      %v1567 = vadd.f32 %v1493, %v1552
      %v1568 = vadd.f32 %v1494, %v1555
      %v1569 = vadd.f32 %v1495, %v1558
      %v1570 = vadd.f32 %v1496, %v1561
      %s1571 = scalar_lea.vmem [#allocation2], 32
      %v1572 = vld [vmem:[%s1571] sm:$0xff]
      %v1573 = vld [vmem:[%s1571 + $0x10] sm:$0xff]
      %v1574 = vld [vmem:[%s1571 + $0x20] sm:$0xff]
      %v1575 = vld [vmem:[%s1571 + $0x30] sm:$0xff]
      %v1576 = vld [vmem:[%s1571 + $0x40] sm:$0xff]
      %v1577 = vld [vmem:[%s1571 + $0x50] sm:$0xff]
      %v1578 = vld [vmem:[%s1571 + $0x60] sm:$0xff]
      %v1579 = vld [vmem:[%s1571 + $0x70] sm:$0xff]
      %s1580 = scalar_lea.vmem %s4, 768
      %v1581 = vld [vmem:[%s1580] sm:$0xff]
      %v1582 = vld [vmem:[%s1580 + $0x8] sm:$0xff]
      %v1583 = vld [vmem:[%s1580 + $0x10] sm:$0xff]
      %v1584 = vld [vmem:[%s1580 + $0x18] sm:$0xff]
      %v1585 = vld [vmem:[%s1580 + $0x20] sm:$0xff]
      %v1586 = vld [vmem:[%s1580 + $0x28] sm:$0xff]
      %v1587 = vld [vmem:[%s1580 + $0x30] sm:$0xff]
      %v1588 = vld [vmem:[%s1580 + $0x38] sm:$0xff]
      %v1589 = vld [vmem:[%s1580 + $0x40] sm:$0xff]
      %v1590 = vld [vmem:[%s1580 + $0x48] sm:$0xff]
      %v1591 = vld [vmem:[%s1580 + $0x50] sm:$0xff]
      %v1592 = vld [vmem:[%s1580 + $0x58] sm:$0xff]
      %v1593 = vld [vmem:[%s1580 + $0x60] sm:$0xff]
      %v1594 = vld [vmem:[%s1580 + $0x68] sm:$0xff]
      %v1595 = vld [vmem:[%s1580 + $0x70] sm:$0xff]
      %v1596 = vld [vmem:[%s1580 + $0x78] sm:$0xff]
      %1597 = vmatpush.msra.mxu0 %v1596
      %1598 = vmatpush.msra.mxu0 %v1595
      %1599 = vmatpush.msra.mxu0 %v1594
      %1600 = vmatpush.msra.mxu0 %v1593
      %1601 = vmatpush.msra.mxu0 %v1592
      %1602 = vmatpush.msra.mxu0 %v1591
      %1603 = vmatpush.msra.mxu0 %v1590
      %1604 = vmatpush.msra.mxu0 %v1589
      %1605 = vmatpush.msra.mxu0 %v1588
      %1606 = vmatpush.msra.mxu0 %v1587
      %1607 = vmatpush.msra.mxu0 %v1586
      %1608 = vmatpush.msra.mxu0 %v1585
      %1609 = vmatpush.msra.mxu0 %v1584
      %1610 = vmatpush.msra.mxu0 %v1583
      %1611 = vmatpush.msra.mxu0 %v1582
      %1612 = vmatpush.msra.mxu0 %v1581
      %1613 = vmatmul.f32.gmra.mxu0 %v1572
      %v1614 = vpop.f32.mrf.mxu0
      %v1615 = vadd.f32 0.0, %v1614
      %1616 = vmatmul.f32.gmra.mxu0 %v1573
      %v1617 = vpop.f32.mrf.mxu0
      %v1618 = vadd.f32 0.0, %v1617
      %1619 = vmatmul.f32.gmra.mxu0 %v1574
      %v1620 = vpop.f32.mrf.mxu0
      %v1621 = vadd.f32 0.0, %v1620
      %1622 = vmatmul.f32.gmra.mxu0 %v1575
      %v1623 = vpop.f32.mrf.mxu0
      %v1624 = vadd.f32 0.0, %v1623
      %1625 = vmatmul.f32.gmra.mxu0 %v1576
      %v1626 = vpop.f32.mrf.mxu0
      %v1627 = vadd.f32 0.0, %v1626
      %1628 = vmatmul.f32.gmra.mxu0 %v1577
      %v1629 = vpop.f32.mrf.mxu0
      %v1630 = vadd.f32 0.0, %v1629
      %1631 = vmatmul.f32.gmra.mxu0 %v1578
      %v1632 = vpop.f32.mrf.mxu0
      %v1633 = vadd.f32 0.0, %v1632
      %1634 = vmatmul.f32.gmra.mxu0 %v1579
      %v1635 = vpop.f32.mrf.mxu0
      %v1636 = vadd.f32 0.0, %v1635
      %1637 = vdwg.mxu0
      %v1638 = vadd.f32 %v1563, %v1615
      %v1639 = vadd.f32 %v1564, %v1618
      %v1640 = vadd.f32 %v1565, %v1621
      %v1641 = vadd.f32 %v1566, %v1624
      %v1642 = vadd.f32 %v1567, %v1627
      %v1643 = vadd.f32 %v1568, %v1630
      %v1644 = vadd.f32 %v1569, %v1633
      %v1645 = vadd.f32 %v1570, %v1636
      %v1646 = vld [vmem:[%s1571 + $0x1] sm:$0xff]
      %v1647 = vld [vmem:[%s1571 + $0x11] sm:$0xff]
      %v1648 = vld [vmem:[%s1571 + $0x21] sm:$0xff]
      %v1649 = vld [vmem:[%s1571 + $0x31] sm:$0xff]
      %v1650 = vld [vmem:[%s1571 + $0x41] sm:$0xff]
      %v1651 = vld [vmem:[%s1571 + $0x51] sm:$0xff]
      %v1652 = vld [vmem:[%s1571 + $0x61] sm:$0xff]
      %v1653 = vld [vmem:[%s1571 + $0x71] sm:$0xff]
      %s1654 = scalar_lea.vmem %s4, 896
      %v1655 = vld [vmem:[%s1654] sm:$0xff]
      %v1656 = vld [vmem:[%s1654 + $0x8] sm:$0xff]
      %v1657 = vld [vmem:[%s1654 + $0x10] sm:$0xff]
      %v1658 = vld [vmem:[%s1654 + $0x18] sm:$0xff]
      %v1659 = vld [vmem:[%s1654 + $0x20] sm:$0xff]
      %v1660 = vld [vmem:[%s1654 + $0x28] sm:$0xff]
      %v1661 = vld [vmem:[%s1654 + $0x30] sm:$0xff]
      %v1662 = vld [vmem:[%s1654 + $0x38] sm:$0xff]
      %v1663 = vld [vmem:[%s1654 + $0x40] sm:$0xff]
      %v1664 = vld [vmem:[%s1654 + $0x48] sm:$0xff]
      %v1665 = vld [vmem:[%s1654 + $0x50] sm:$0xff]
      %v1666 = vld [vmem:[%s1654 + $0x58] sm:$0xff]
      %v1667 = vld [vmem:[%s1654 + $0x60] sm:$0xff]
      %v1668 = vld [vmem:[%s1654 + $0x68] sm:$0xff]
      %v1669 = vld [vmem:[%s1654 + $0x70] sm:$0xff]
      %v1670 = vld [vmem:[%s1654 + $0x78] sm:$0xff]
      %1671 = vmatpush.msra.mxu0 %v1670
      %1672 = vmatpush.msra.mxu0 %v1669
      %1673 = vmatpush.msra.mxu0 %v1668
      %1674 = vmatpush.msra.mxu0 %v1667
      %1675 = vmatpush.msra.mxu0 %v1666
      %1676 = vmatpush.msra.mxu0 %v1665
      %1677 = vmatpush.msra.mxu0 %v1664
      %1678 = vmatpush.msra.mxu0 %v1663
      %1679 = vmatpush.msra.mxu0 %v1662
      %1680 = vmatpush.msra.mxu0 %v1661
      %1681 = vmatpush.msra.mxu0 %v1660
      %1682 = vmatpush.msra.mxu0 %v1659
      %1683 = vmatpush.msra.mxu0 %v1658
      %1684 = vmatpush.msra.mxu0 %v1657
      %1685 = vmatpush.msra.mxu0 %v1656
      %1686 = vmatpush.msra.mxu0 %v1655
      %1687 = vmatmul.f32.gmra.mxu0 %v1646
      %v1688 = vpop.f32.mrf.mxu0
      %v1689 = vadd.f32 0.0, %v1688
      %1690 = vmatmul.f32.gmra.mxu0 %v1647
      %v1691 = vpop.f32.mrf.mxu0
      %v1692 = vadd.f32 0.0, %v1691
      %1693 = vmatmul.f32.gmra.mxu0 %v1648
      %v1694 = vpop.f32.mrf.mxu0
      %v1695 = vadd.f32 0.0, %v1694
      %1696 = vmatmul.f32.gmra.mxu0 %v1649
      %v1697 = vpop.f32.mrf.mxu0
      %v1698 = vadd.f32 0.0, %v1697
      %1699 = vmatmul.f32.gmra.mxu0 %v1650
      %v1700 = vpop.f32.mrf.mxu0
      %v1701 = vadd.f32 0.0, %v1700
      %1702 = vmatmul.f32.gmra.mxu0 %v1651
      %v1703 = vpop.f32.mrf.mxu0
      %v1704 = vadd.f32 0.0, %v1703
      %1705 = vmatmul.f32.gmra.mxu0 %v1652
      %v1706 = vpop.f32.mrf.mxu0
      %v1707 = vadd.f32 0.0, %v1706
      %1708 = vmatmul.f32.gmra.mxu0 %v1653
      %v1709 = vpop.f32.mrf.mxu0
      %v1710 = vadd.f32 0.0, %v1709
      %1711 = vdwg.mxu0
      %v1712 = vadd.f32 %v1638, %v1689
      %v1713 = vadd.f32 %v1639, %v1692
      %v1714 = vadd.f32 %v1640, %v1695
      %v1715 = vadd.f32 %v1641, %v1698
      %v1716 = vadd.f32 %v1642, %v1701
      %v1717 = vadd.f32 %v1643, %v1704
      %v1718 = vadd.f32 %v1644, %v1707
      %v1719 = vadd.f32 %v1645, %v1710
      %v1720 = vld [vmem:[%s1571 + $0x2] sm:$0xff]
      %v1721 = vld [vmem:[%s1571 + $0x12] sm:$0xff]
      %v1722 = vld [vmem:[%s1571 + $0x22] sm:$0xff]
      %v1723 = vld [vmem:[%s1571 + $0x32] sm:$0xff]
      %v1724 = vld [vmem:[%s1571 + $0x42] sm:$0xff]
      %v1725 = vld [vmem:[%s1571 + $0x52] sm:$0xff]
      %v1726 = vld [vmem:[%s1571 + $0x62] sm:$0xff]
      %v1727 = vld [vmem:[%s1571 + $0x72] sm:$0xff]
      %s1728 = scalar_lea.vmem %s4, 1024
      %v1729 = vld [vmem:[%s1728] sm:$0xff]
      %v1730 = vld [vmem:[%s1728 + $0x8] sm:$0xff]
      %v1731 = vld [vmem:[%s1728 + $0x10] sm:$0xff]
      %v1732 = vld [vmem:[%s1728 + $0x18] sm:$0xff]
      %v1733 = vld [vmem:[%s1728 + $0x20] sm:$0xff]
      %v1734 = vld [vmem:[%s1728 + $0x28] sm:$0xff]
      %v1735 = vld [vmem:[%s1728 + $0x30] sm:$0xff]
      %v1736 = vld [vmem:[%s1728 + $0x38] sm:$0xff]
      %v1737 = vld [vmem:[%s1728 + $0x40] sm:$0xff]
      %v1738 = vld [vmem:[%s1728 + $0x48] sm:$0xff]
      %v1739 = vld [vmem:[%s1728 + $0x50] sm:$0xff]
      %v1740 = vld [vmem:[%s1728 + $0x58] sm:$0xff]
      %v1741 = vld [vmem:[%s1728 + $0x60] sm:$0xff]
      %v1742 = vld [vmem:[%s1728 + $0x68] sm:$0xff]
      %v1743 = vld [vmem:[%s1728 + $0x70] sm:$0xff]
      %v1744 = vld [vmem:[%s1728 + $0x78] sm:$0xff]
      %1745 = vmatpush.msra.mxu0 %v1744
      %1746 = vmatpush.msra.mxu0 %v1743
      %1747 = vmatpush.msra.mxu0 %v1742
      %1748 = vmatpush.msra.mxu0 %v1741
      %1749 = vmatpush.msra.mxu0 %v1740
      %1750 = vmatpush.msra.mxu0 %v1739
      %1751 = vmatpush.msra.mxu0 %v1738
      %1752 = vmatpush.msra.mxu0 %v1737
      %1753 = vmatpush.msra.mxu0 %v1736
      %1754 = vmatpush.msra.mxu0 %v1735
      %1755 = vmatpush.msra.mxu0 %v1734
      %1756 = vmatpush.msra.mxu0 %v1733
      %1757 = vmatpush.msra.mxu0 %v1732
      %1758 = vmatpush.msra.mxu0 %v1731
      %1759 = vmatpush.msra.mxu0 %v1730
      %1760 = vmatpush.msra.mxu0 %v1729
      %1761 = vmatmul.f32.gmra.mxu0 %v1720
      %v1762 = vpop.f32.mrf.mxu0
      %v1763 = vadd.f32 0.0, %v1762
      %1764 = vmatmul.f32.gmra.mxu0 %v1721
      %v1765 = vpop.f32.mrf.mxu0
      %v1766 = vadd.f32 0.0, %v1765
      %1767 = vmatmul.f32.gmra.mxu0 %v1722
      %v1768 = vpop.f32.mrf.mxu0
      %v1769 = vadd.f32 0.0, %v1768
      %1770 = vmatmul.f32.gmra.mxu0 %v1723
      %v1771 = vpop.f32.mrf.mxu0
      %v1772 = vadd.f32 0.0, %v1771
      %1773 = vmatmul.f32.gmra.mxu0 %v1724
      %v1774 = vpop.f32.mrf.mxu0
      %v1775 = vadd.f32 0.0, %v1774
      %1776 = vmatmul.f32.gmra.mxu0 %v1725
      %v1777 = vpop.f32.mrf.mxu0
      %v1778 = vadd.f32 0.0, %v1777
      %1779 = vmatmul.f32.gmra.mxu0 %v1726
      %v1780 = vpop.f32.mrf.mxu0
      %v1781 = vadd.f32 0.0, %v1780
      %1782 = vmatmul.f32.gmra.mxu0 %v1727
      %v1783 = vpop.f32.mrf.mxu0
      %v1784 = vadd.f32 0.0, %v1783
      %1785 = vdwg.mxu0
      %v1786 = vadd.f32 %v1712, %v1763
      %v1787 = vadd.f32 %v1713, %v1766
      %v1788 = vadd.f32 %v1714, %v1769
      %v1789 = vadd.f32 %v1715, %v1772
      %v1790 = vadd.f32 %v1716, %v1775
      %v1791 = vadd.f32 %v1717, %v1778
      %v1792 = vadd.f32 %v1718, %v1781
      %v1793 = vadd.f32 %v1719, %v1784
      %v1794 = vld [vmem:[%s5] sm:$0x1]
      %v1796 = vperm.slane %v1794, 0
      %v1798 = vadd.f32 %v1786, %v1796
      %v1799 = vadd.f32 %v1787, %v1796
      %v1800 = vadd.f32 %v1788, %v1796
      %v1801 = vadd.f32 %v1789, %v1796
      %v1802 = vadd.f32 %v1790, %v1796
      %v1803 = vadd.f32 %v1791, %v1796
      %v1804 = vadd.f32 %v1792, %v1796
      %v1805 = vadd.f32 %v1793, %v1796
      %v1806 = vld [vmem:[%s325] sm:$0xff]
      %v1807 = vld [vmem:[%s325 + $0x8] sm:$0xff]
      %v1808 = vld [vmem:[%s325 + $0x10] sm:$0xff]
      %v1809 = vld [vmem:[%s325 + $0x18] sm:$0xff]
      %v1810 = vld [vmem:[%s325 + $0x20] sm:$0xff]
      %v1811 = vld [vmem:[%s325 + $0x28] sm:$0xff]
      %v1812 = vld [vmem:[%s325 + $0x30] sm:$0xff]
      %v1813 = vld [vmem:[%s325 + $0x38] sm:$0xff]
      %v1814 = vld [vmem:[%s6] sm:$0xf]
      %v1815 = vld [vmem:[%s7] sm:$0x1]
      %v1817 = vperm.slane %v1815, 0
      %v1820 = vsel %vm351, %v1806, 0
      %v1823 = vsel %vm351, %v1807, 0
      %v1826 = vsel %vm351, %v1808, 0
      %v1829 = vsel %vm351, %v1809, 0
      %v1832 = vsel %vm351, %v1810, 0
      %v1835 = vsel %vm351, %v1811, 0
      %v1838 = vsel %vm351, %v1812, 0
      %v1841 = vsel %vm351, %v1813, 0
      %v1844 = vsel %vm376, %v1814, 0
      %1846 = vmatpush.msra.mxu0 0.0
      %1847 = vmatpush.msra.mxu0 0.0
      %1848 = vmatpush.msra.mxu0 0.0
      %1849 = vmatpush.msra.mxu0 0.0
      %1850 = vmatpush.msra.mxu0 0.0
      %1851 = vmatpush.msra.mxu0 0.0
      %1852 = vmatpush.msra.mxu0 0.0
      %1853 = vmatpush.msra.mxu0 0.0
      %1854 = vmatpush.msra.mxu0 0.0
      %1855 = vmatpush.msra.mxu0 0.0
      %1856 = vmatpush.msra.mxu0 0.0
      %1857 = vmatpush.msra.mxu0 0.0
      %1858 = vmatpush.msra.mxu0 0.0
      %1859 = vmatpush.msra.mxu0 0.0
      %1860 = vmatpush.msra.mxu0 0.0
      %1861 = vmatpush.msra.mxu0 %v1844
      %1862 = vmatmul.f32.gmra.mxu0 %v1820
      %v1863 = vpop.f32.mrf.mxu0
      %v1864 = vadd.f32 %v1817, %v1863
      %1865 = vmatmul.f32.gmra.mxu0 %v1823
      %v1866 = vpop.f32.mrf.mxu0
      %v1867 = vadd.f32 %v1817, %v1866
      %1868 = vmatmul.f32.gmra.mxu0 %v1826
      %v1869 = vpop.f32.mrf.mxu0
      %v1870 = vadd.f32 %v1817, %v1869
      %1871 = vmatmul.f32.gmra.mxu0 %v1829
      %v1872 = vpop.f32.mrf.mxu0
      %v1873 = vadd.f32 %v1817, %v1872
      %1874 = vmatmul.f32.gmra.mxu0 %v1832
      %v1875 = vpop.f32.mrf.mxu0
      %v1876 = vadd.f32 %v1817, %v1875
      %1877 = vmatmul.f32.gmra.mxu0 %v1835
      %v1878 = vpop.f32.mrf.mxu0
      %v1879 = vadd.f32 %v1817, %v1878
      %1880 = vmatmul.f32.gmra.mxu0 %v1838
      %v1881 = vpop.f32.mrf.mxu0
      %v1882 = vadd.f32 %v1817, %v1881
      %1883 = vmatmul.f32.gmra.mxu0 %v1841
      %v1884 = vpop.f32.mrf.mxu0
      %v1885 = vadd.f32 %v1817, %v1884
      %1886 = vdwg.mxu0
      %v1887 = vadd.f32 %v1798, %v1864
      %v1888 = vadd.f32 %v1799, %v1867
      %v1889 = vadd.f32 %v1800, %v1870
      %v1890 = vadd.f32 %v1801, %v1873
      %v1891 = vadd.f32 %v1802, %v1876
      %v1892 = vadd.f32 %v1803, %v1879
      %v1893 = vadd.f32 %v1804, %v1882
      %v1894 = vadd.f32 %v1805, %v1885
      %v1895 = vmax.f32 %v1887, 0.0
      %v1896 = vmax.f32 %v1888, 0.0
      %v1897 = vmax.f32 %v1889, 0.0
      %v1898 = vmax.f32 %v1890, 0.0
      %v1899 = vmax.f32 %v1891, 0.0
      %v1900 = vmax.f32 %v1892, 0.0
      %v1901 = vmax.f32 %v1893, 0.0
      %v1902 = vmax.f32 %v1894, 0.0
      %1903 = vst [vmem:[%s330] sm:$0xff] %v1895
      %1904 = vst [vmem:[%s330 + $0x8] sm:$0xff] %v1896
      %1905 = vst [vmem:[%s330 + $0x10] sm:$0xff] %v1897
      %1906 = vst [vmem:[%s330 + $0x18] sm:$0xff] %v1898
      %1907 = vst [vmem:[%s330 + $0x20] sm:$0xff] %v1899
      %1908 = vst [vmem:[%s330 + $0x28] sm:$0xff] %v1900
      %1909 = vst [vmem:[%s330 + $0x30] sm:$0xff] %v1901
      %1910 = vst [vmem:[%s330 + $0x38] sm:$0xff] %v1902
      %p1911 = scmp.lt.s32.totalorder %s19, 1
      %s1912 = scalar_select %p1911, %s19, 1
      %s1913 = smul.addr %s1912, 8
      %s1914 = smul.addr %s1913, 8
      %s1915 = scalar_lea.vmem %s8, %s1914
      // Predicated region
      $region53: #{residual_block_forward.1} parent=51 // pred_check
        %p1916 = pneg %p215
      $region54: #{residual_block_forward.1} parent=51 // pred_check_branch
        %1918 = sbr.rel (%p1916) target = $region56
      $region55: #{residual_block_forward.1} parent=51 // pred_region
        _
      $region56: #{residual_block_forward.1} parent=51 // pred_fallthru
        _
    $region52: #{residual_block_forward.1} parent=5 // pred_fallthru
      _
    %p1919 = scmp.le.s32.totalorder 2, %s14
    // Predicated region
    $region57: #{residual_block_forward.1} parent=5 // pred_check
      %p1920 = pneg %p1919
    $region58: #{residual_block_forward.1} parent=5 // pred_check_branch
      %1922 = sbr.rel (%p1920) target = $region60
    $region59: #{residual_block_forward.1} parent=5 // pred_region
      %s1923 = ssub.s32 %s14, 2
      // Predicated region
      $region61: #{residual_block_forward.1} parent=59 // pred_check
        %p1924 = pneg %p221
      $region62: #{residual_block_forward.1} parent=59 // pred_check_branch
        %1926 = sbr.rel (%p1924) target = $region64
      $region63: #{residual_block_forward.1} parent=59 // pred_region
        %p1927 = scmp.lt.s32.totalorder %s20, 1
        %s1928 = scalar_select %p1927, %s20, 1
        %s1929 = smul.addr %s1928, 8
        %s1930 = smul.addr %s1929, 8
        %s1931 = scalar_lea.vmem %s8, %s1930
      $region64: #{residual_block_forward.1} parent=59 // pred_fallthru
        _
    $region60: #{residual_block_forward.1} parent=5 // pred_fallthru
      _
  $region6: #{residual_block_forward.1} parent=0 // loop_footer
    %s18 = sadd.s32 1, %s14
  $region7: #{residual_block_forward.1} parent=0 // loop_footer_branch
    %13 = sbr.rel target = $region3
  $region8: #{residual_block_forward.1} parent=0 // loop_exit
    _

</llo_original>
